<compile_context>
chip_gen: v7x
topology: tpu7x:2x2x1
jax: 0.10.0
libtpu: 0.0.40
codegen_flags: <defaults>
</compile_context>

<pallas_src>
import functools

import numpy as np
import jax
import jax.numpy as jnp
from jax.experimental import pallas as pl
from jax.experimental.pallas import tpu as pltpu

_CIN_PAD = 8  # pad channel dims to one f32 sublane tile


# ----------------------------------------------------------------------------
# Trace-time (numpy) constants
# ----------------------------------------------------------------------------
def _spectral_operator(H, W):
    """Real (2*H*W, H*W) matrix folding the whole per-channel frequency pipeline.

    out_c_flat = x_c_flat @ A + fake_c_flat @ B, stacked as [[A],[B]], where A/B
    absorb fft2 -> fftshift -> radial mask -> ifftshift -> ifft2 -> Re(.)
    (row-major flattening; flat(F X F) == flat(X) @ kron(F, F) for symmetric F).
    """
    nh, nw = np.arange(H), np.arange(W)
    FH = np.exp(-2j * np.pi * np.outer(nh, nh) / H)          # forward DFT (rows)
    FW = np.exp(-2j * np.pi * np.outer(nw, nw) / W)          # forward DFT (cols)
    GH = np.exp(+2j * np.pi * np.outer(nh, nh) / H) / H      # inverse DFT (1/H)
    GW = np.exp(+2j * np.pi * np.outer(nw, nw) / W) / W      # inverse DFT (1/W)

    # TODO(synk): get_mask_matrix assumed = inclusive l2 annulus on the fftshifted
    # spectrum; lf: d in [0, 10], hf: d in [11, H] (bins with 10 < d < 11 zeroed).
    ii, jj = np.meshgrid(np.arange(H), np.arange(W), indexing="ij")
    d = np.sqrt((ii - H // 2) ** 2 + (jj - W // 2) ** 2)
    mask_lf = ((d >= 0.0) & (d <= 10.0)).astype(np.float64)
    mask_hf = ((d >= 11.0) & (d <= float(H))).astype(np.float64)
    mlf = np.fft.ifftshift(mask_lf).ravel()   # act directly on raw fft2 output
    mhf = np.fft.ifftshift(mask_hf).ravel()

    FF = np.kron(FH, FW)                      # flat(F X F) == flat(X) @ FF
    GG = np.kron(GH, GW)                      # flat(G R G) == flat(R) @ GG
    A = np.real((FF * mlf[None, :]) @ GG)     # original-image (low-freq) path
    B = np.real((FF * mhf[None, :]) @ GG)     # fake-image (high-freq) path
    return np.concatenate([A, B], axis=0)     # (2*H*W, H*W)


def _tiled_tap_masks(H, W, K):
    """(K*K*_CIN_PAD, H*W) 0/1 masks: validity of each conv tap at each output
    pixel, pre-tiled over the 8 padded input channels → one full-tile multiply."""
    P = K // 2
    hh, ww = np.meshgrid(np.arange(H), np.arange(W), indexing="ij")
    masks = np.zeros((K * K, H * W), np.float32)
    for kh in range(K):
        for kw in range(K):
            valid = ((hh + kh - P >= 0) & (hh + kh - P < H) &
                     (ww + kw - P >= 0) & (ww + kw - P < W))
            masks[kh * K + kw] = valid.ravel().astype(np.float32)
    return np.repeat(masks, _CIN_PAD, axis=0)


# ----------------------------------------------------------------------------
# Fused Pallas kernel: noise + toy_kernel convs + spectral mix + normalize
# ----------------------------------------------------------------------------
def _energy_mixup_kernel(x_ref, u_ref, w1_ref, w2_ref, ab_ref, taps_ref, o_ref,
                         *, C, H, W, K):
    HW = H * W
    P = K // 2
    PAD = ((P * W + P + 127) // 128) * 128    # lane-aligned zero-pad width

    x8 = x_ref[0]                             # (8, HW) f32; rows >= C are zero
    u8 = u_ref[0]                             # (8, HW) f32 U[0,1); rows >= C zero

    # ---- noise = min_max_normalize(rand_like(x)) * x.mean() / 10
    # TODO(synk): min_max_normalize assumed = (v - min) / (max - min) over the tensor.
    u_used = u8[:C, :]
    u_min = jnp.min(u_used)
    u_rng = jnp.max(u_used) - u_min
    x_mean = jnp.mean(x8[:C, :])
    noise = (u8 - u_min) / (u_rng + 1e-8) * (x_mean * 0.1)
    # Rows >= C of `real` carry junk from the padded noise rows, but w1's columns
    # for those input channels are zero, so they never reach the conv output.
    real = x8 + noise                         # (8, HW) f32

    taps = taps_ref[...]                      # (K*K*8, HW) bf16 0/1 tap masks

    def conv_same(v_f32, w_ref_):
        # 'same' KxK conv on lane-dense rows: bf16 lane-aligned zero pad, K*K
        # statically shifted lane slices, tile-aligned sublane stack (im2col),
        # ONE full-tile border-mask multiply, ONE folded-bias ones row, ONE bf16
        # MXU matmul with f32 accumulation.
        v = v_f32.astype(jnp.bfloat16)
        z = jnp.zeros((v.shape[0], PAD), jnp.bfloat16)
        vpad = jnp.concatenate([z, v, z], axis=1)            # (8, HW + 2*PAD)
        cols = []
        for kh in range(K):
            for kw in range(K):
                s = PAD + (kh - P) * W + (kw - P)
                cols.append(vpad[:, s:s + HW])                # (8, HW)
        patches = jnp.concatenate(cols, axis=0) * taps        # (K*K*8, HW)
        ones = jnp.ones((1, HW), jnp.bfloat16)                # folded-bias row
        patches = jnp.concatenate([patches, ones], axis=0)    # (K*K*8 + 1, HW)
        return jnp.dot(w_ref_[...], patches,
                       preferred_element_type=jnp.float32)    # (8, HW) f32

    # toy_kernel(number=8, kernel_size=5, channels=3):
    #   Conv2d(3->8, 5, pad=2) -> ReLU -> Conv2d(8->3, 5, pad=2)
    h1 = jnp.maximum(conv_same(real, w1_ref), 0.0)            # (8, HW)
    fake8 = conv_same(h1, w2_ref)                             # (8, HW); rows >= C zero

    # ---- spectral mix, fully folded into one lane-dense MXU matmul:
    #   out_c = Re(ifft2(ifftshift( fftshift(fft2(x_c))*m_lf
    #                             + fftshift(fft2(fake_c))*m_hf )))
    #         = [x_c | fake_c] @ [[A],[B]]
    zcat = jnp.concatenate([x8, fake8], axis=1).astype(jnp.bfloat16)      # (8, 2*HW)
    mix = jnp.dot(zcat, ab_ref[...], preferred_element_type=jnp.float32)  # (8, HW)

    # ---- per-channel min-max normalize (padded rows >= C stay exactly zero)
    mn = jnp.min(mix, axis=1, keepdims=True)
    mx = jnp.max(mix, axis=1, keepdims=True)
    o_ref[0] = (mix - mn) / (mx - mn + 1e-8)                  # unmasked (8, HW) store


# ----------------------------------------------------------------------------
# Wrapper: EnergyMixup.forward (augmentation branch), batched over images
# ----------------------------------------------------------------------------
@jax.jit
def energy_mixup(x, params, key):
    """x: (B, C, H, W) f32 — the torch forward applied independently per image."""
    w1, b1, w2, b2 = params
    B, C, H, W = x.shape
    K = w1.shape[-1]
    HW = H * W
    assert C <= _CIN_PAD

    # Trace-time constants (VMEM-resident across the whole batch grid).
    # NOTE: `ab` is O((H*W)^2): 256 KiB bf16 at 16x16 but 4 MiB at 32x32 and
    # 64 MiB at 64x64 (v7x's entire VMEM) — tile the spectral matmul over lane
    # blocks or switch to an on-chip FFT before scaling H, W.
    ab = jnp.asarray(_spectral_operator(H, W), jnp.bfloat16)          # (2*HW, HW)
    taps = jnp.asarray(_tiled_tap_masks(H, W, K), jnp.bfloat16)       # (K*K*8, HW)

    # Conv weights as lane-dense (Cout_pad, K*K*Cin_pad + 1) bf16 matrices with the
    # bias folded into the last column; channel dims padded to 8 sublanes.
    w1t = jnp.transpose(w1, (0, 2, 3, 1))                             # (Cout, K, K, Cin)
    w1t = jnp.pad(w1t, ((0, 0), (0, 0), (0, 0), (0, _CIN_PAD - w1.shape[1])))
    w1m = jnp.concatenate([w1t.reshape(w1.shape[0], -1), b1.reshape(-1, 1)], axis=1)
    w1m = jnp.pad(w1m, ((0, _CIN_PAD - w1.shape[0]), (0, 0))).astype(jnp.bfloat16)

    w2t = jnp.transpose(w2, (0, 2, 3, 1)).reshape(w2.shape[0], -1)    # (C, K*K*8)
    w2m = jnp.concatenate([w2t, b2.reshape(-1, 1)], axis=1)
    w2m = jnp.pad(w2m, ((0, _CIN_PAD - w2.shape[0]), (0, 0))).astype(jnp.bfloat16)

    # Per-image operands, lane-dense, channels padded to 8 sublanes.
    x8 = jnp.pad(x.reshape(B, C, HW).astype(jnp.float32),
                 ((0, 0), (0, _CIN_PAD - C), (0, 0)))
    # Independent U[0,1) noise per image (torch.rand_like); drawn with XLA because
    # the in-kernel TPU PRNG has no interpret/CPU lowering.
    u = jax.random.uniform(key, (B, C, HW), jnp.float32)
    u8 = jnp.pad(u, ((0, 0), (0, _CIN_PAD - C), (0, 0)))

    kernel = functools.partial(_energy_mixup_kernel, C=C, H=H, W=W, K=K)
    img_spec = pl.BlockSpec((1, _CIN_PAD, HW), lambda b: (b, 0, 0))

    def resident(arr):  # constants: same block every grid step -> DMA'd once
        return pl.BlockSpec(arr.shape, lambda b: (0,) * arr.ndim)

    out8 = pl.pallas_call(
        kernel,
        grid=(B,),
        out_shape=jax.ShapeDtypeStruct((B, _CIN_PAD, HW), jnp.float32),
        in_specs=[img_spec, img_spec,
                  resident(w1m), resident(w2m), resident(ab), resident(taps)],
        out_specs=img_spec,
        compiler_params=pltpu.CompilerParams(
            dimension_semantics=("parallel",)),   # v7x: shard batch over 2 TCs
    )(x8, u8, w1m, w2m, ab, taps)

    return out8[:, :C, :].reshape(B, C, H, W)


if __name__ == "__main__":
    key = jax.random.PRNGKey(0)
    k_x, k_w1, k_b1, k_w2, k_b2, k_noise = jax.random.split(key, 6)

    B, C, H, W = 4, 3, 16, 16
    x = jax.random.uniform(k_x, (B, C, H, W), jnp.float32)

    # Deterministic synthetic toy_kernel weights (no checkpoint load).
    w1 = 0.1 * jax.random.normal(k_w1, (8, 3, 5, 5), jnp.float32)
    b1 = 0.1 * jax.random.normal(k_b1, (8,), jnp.float32)
    w2 = 0.1 * jax.random.normal(k_w2, (3, 8, 5, 5), jnp.float32)
    b2 = 0.1 * jax.random.normal(k_b2, (3,), jnp.float32)

    out = energy_mixup(x, (w1, b1, w2, b2), k_noise)
    out = jax.block_until_ready(out)

    assert out.shape == (B, C, H, W)
    assert bool(jnp.all(jnp.isfinite(out)))
    assert float(jnp.min(out)) >= -1e-2 and float(jnp.max(out)) <= 1.0 + 1e-2
    print("KERNEL_OK")
</pallas_src>

<mosaic_0001>
module attributes {stable_mosaic.version = 11 : i64} {
  func.func @_energy_mixup_kernel(%arg0: i32, %arg1: memref<1x8x256xf32, #tpu.memory_space<vmem>>, %arg2: memref<1x8x256xf32, #tpu.memory_space<vmem>>, %arg3: memref<8x201xbf16, #tpu.memory_space<vmem>>, %arg4: memref<8x201xbf16, #tpu.memory_space<vmem>>, %arg5: memref<512x256xbf16, #tpu.memory_space<vmem>>, %arg6: memref<200x256xbf16, #tpu.memory_space<vmem>>, %arg7: memref<1x8x256xf32, #tpu.memory_space<vmem>>) attributes {dimension_semantics = [#tpu.dimension_semantics<parallel>], iteration_bounds = array<i64: 4>, scalar_prefetch = 0 : i64, scratch_operands = 0 : i64, tpu.core_type = #tpu.core_type<tc>, window_params = [{transform_indices = @transform_0, window_bounds = array<i64: 1, 8, 256>}, {transform_indices = @transform_1, window_bounds = array<i64: 1, 8, 256>}, {pipeline_mode = #tpu.pipeline_mode<synchronous>, transform_indices = @transform_2, window_bounds = array<i64: 8, 201>}, {pipeline_mode = #tpu.pipeline_mode<synchronous>, transform_indices = @transform_3, window_bounds = array<i64: 8, 201>}, {pipeline_mode = #tpu.pipeline_mode<synchronous>, transform_indices = @transform_4, window_bounds = array<i64: 512, 256>}, {pipeline_mode = #tpu.pipeline_mode<synchronous>, transform_indices = @transform_5, window_bounds = array<i64: 200, 256>}, {transform_indices = @transform_6, window_bounds = array<i64: 1, 8, 256>}]} {
    %c0 = arith.constant 0 : index
    %c0_0 = arith.constant 0 : index
    %c0_1 = arith.constant 0 : index
    %0 = vector.load %arg1[%c0, %c0_0, %c0_1] : memref<1x8x256xf32, #tpu.memory_space<vmem>>, vector<1x8x256xf32>
    %1 = vector.shape_cast %0 : vector<1x8x256xf32> to vector<8x256xf32>
    %c0_2 = arith.constant 0 : index
    %c0_3 = arith.constant 0 : index
    %c0_4 = arith.constant 0 : index
    %2 = vector.load %arg2[%c0_2, %c0_3, %c0_4] : memref<1x8x256xf32, #tpu.memory_space<vmem>>, vector<1x8x256xf32>
    %3 = vector.shape_cast %2 : vector<1x8x256xf32> to vector<8x256xf32>
    %4 = vector.extract_strided_slice %3 {offsets = [0, 0], sizes = [3, 256], strides = [1, 1]} : vector<8x256xf32> to vector<3x256xf32>
    %5 = vector.shape_cast %4 : vector<3x256xf32> to vector<1x3x256xf32>
    %cst = arith.constant dense<0x7F800000> : vector<1xf32>
    %6 = vector.multi_reduction <minimumf>, %5, %cst [1, 2] : vector<1x3x256xf32> to vector<1xf32>
    %7 = vector.shape_cast %6 : vector<1xf32> to vector<1x1x1xf32>
    %8 = vector.extract %7[0, 0, 0] : f32 from vector<1x1x1xf32>
    %9 = vector.shape_cast %4 : vector<3x256xf32> to vector<1x3x256xf32>
    %cst_5 = arith.constant dense<0xFF800000> : vector<1xf32>
    %10 = vector.multi_reduction <maximumf>, %9, %cst_5 [1, 2] : vector<1x3x256xf32> to vector<1xf32>
    %11 = vector.shape_cast %10 : vector<1xf32> to vector<1x1x1xf32>
    %12 = vector.extract %11[0, 0, 0] : f32 from vector<1x1x1xf32>
    %13 = arith.subf %12, %8 : f32
    %14 = vector.extract_strided_slice %1 {offsets = [0, 0], sizes = [3, 256], strides = [1, 1]} : vector<8x256xf32> to vector<3x256xf32>
    %15 = vector.shape_cast %14 : vector<3x256xf32> to vector<1x3x256xf32>
    %cst_6 = arith.constant dense<0.000000e+00> : vector<1xf32>
    %16 = vector.multi_reduction <add>, %15, %cst_6 [1, 2] : vector<1x3x256xf32> to vector<1xf32>
    %17 = vector.shape_cast %16 : vector<1xf32> to vector<1x1x1xf32>
    %18 = vector.extract %17[0, 0, 0] : f32 from vector<1x1x1xf32>
    %cst_7 = arith.constant 7.680000e+02 : f32
    %19 = arith.divf %18, %cst_7 : f32
    %20 = vector.broadcast %8 : f32 to vector<8x256xf32>
    %21 = arith.subf %3, %20 : vector<8x256xf32>
    %cst_8 = arith.constant 9.99999993E-9 : f32
    %22 = arith.addf %13, %cst_8 : f32
    %23 = vector.broadcast %22 : f32 to vector<8x256xf32>
    %24 = arith.divf %21, %23 : vector<8x256xf32>
    %cst_9 = arith.constant 1.000000e-01 : f32
    %25 = arith.mulf %19, %cst_9 : f32
    %26 = vector.broadcast %25 : f32 to vector<8x256xf32>
    %27 = arith.mulf %24, %26 : vector<8x256xf32>
    %28 = arith.addf %1, %27 : vector<8x256xf32>
    %c0_10 = arith.constant 0 : index
    %c0_11 = arith.constant 0 : index
    %29 = vector.load %arg6[%c0_10, %c0_11] : memref<200x256xbf16, #tpu.memory_space<vmem>>, vector<200x256xbf16>
    %30 = arith.truncf %28 : vector<8x256xf32> to vector<8x256xbf16>
    %cst_12 = arith.constant 0.000000e+00 : bf16
    %31 = vector.broadcast %cst_12 : bf16 to vector<8x128xbf16>
    %32 = tpu.concatenate %31, %30, %31 in 1 : vector<8x128xbf16>, vector<8x256xbf16>, vector<8x128xbf16> -> vector<8x512xbf16>
    %33 = vector.extract_strided_slice %32 {offsets = [0, 94], sizes = [8, 256], strides = [1, 1]} : vector<8x512xbf16> to vector<8x256xbf16>
    %34 = vector.extract_strided_slice %32 {offsets = [0, 95], sizes = [8, 256], strides = [1, 1]} : vector<8x512xbf16> to vector<8x256xbf16>
    %35 = vector.extract_strided_slice %32 {offsets = [0, 96], sizes = [8, 256], strides = [1, 1]} : vector<8x512xbf16> to vector<8x256xbf16>
    %36 = vector.extract_strided_slice %32 {offsets = [0, 97], sizes = [8, 256], strides = [1, 1]} : vector<8x512xbf16> to vector<8x256xbf16>
    %37 = vector.extract_strided_slice %32 {offsets = [0, 98], sizes = [8, 256], strides = [1, 1]} : vector<8x512xbf16> to vector<8x256xbf16>
    %38 = vector.extract_strided_slice %32 {offsets = [0, 110], sizes = [8, 256], strides = [1, 1]} : vector<8x512xbf16> to vector<8x256xbf16>
    %39 = vector.extract_strided_slice %32 {offsets = [0, 111], sizes = [8, 256], strides = [1, 1]} : vector<8x512xbf16> to vector<8x256xbf16>
    %40 = vector.extract_strided_slice %32 {offsets = [0, 112], sizes = [8, 256], strides = [1, 1]} : vector<8x512xbf16> to vector<8x256xbf16>
    %41 = vector.extract_strided_slice %32 {offsets = [0, 113], sizes = [8, 256], strides = [1, 1]} : vector<8x512xbf16> to vector<8x256xbf16>
    %42 = vector.extract_strided_slice %32 {offsets = [0, 114], sizes = [8, 256], strides = [1, 1]} : vector<8x512xbf16> to vector<8x256xbf16>
    %43 = vector.extract_strided_slice %32 {offsets = [0, 126], sizes = [8, 256], strides = [1, 1]} : vector<8x512xbf16> to vector<8x256xbf16>
    %44 = vector.extract_strided_slice %32 {offsets = [0, 127], sizes = [8, 256], strides = [1, 1]} : vector<8x512xbf16> to vector<8x256xbf16>
    %45 = vector.extract_strided_slice %32 {offsets = [0, 128], sizes = [8, 256], strides = [1, 1]} : vector<8x512xbf16> to vector<8x256xbf16>
    %46 = vector.extract_strided_slice %32 {offsets = [0, 129], sizes = [8, 256], strides = [1, 1]} : vector<8x512xbf16> to vector<8x256xbf16>
    %47 = vector.extract_strided_slice %32 {offsets = [0, 130], sizes = [8, 256], strides = [1, 1]} : vector<8x512xbf16> to vector<8x256xbf16>
    %48 = vector.extract_strided_slice %32 {offsets = [0, 142], sizes = [8, 256], strides = [1, 1]} : vector<8x512xbf16> to vector<8x256xbf16>
    %49 = vector.extract_strided_slice %32 {offsets = [0, 143], sizes = [8, 256], strides = [1, 1]} : vector<8x512xbf16> to vector<8x256xbf16>
    %50 = vector.extract_strided_slice %32 {offsets = [0, 144], sizes = [8, 256], strides = [1, 1]} : vector<8x512xbf16> to vector<8x256xbf16>
    %51 = vector.extract_strided_slice %32 {offsets = [0, 145], sizes = [8, 256], strides = [1, 1]} : vector<8x512xbf16> to vector<8x256xbf16>
    %52 = vector.extract_strided_slice %32 {offsets = [0, 146], sizes = [8, 256], strides = [1, 1]} : vector<8x512xbf16> to vector<8x256xbf16>
    %53 = vector.extract_strided_slice %32 {offsets = [0, 158], sizes = [8, 256], strides = [1, 1]} : vector<8x512xbf16> to vector<8x256xbf16>
    %54 = vector.extract_strided_slice %32 {offsets = [0, 159], sizes = [8, 256], strides = [1, 1]} : vector<8x512xbf16> to vector<8x256xbf16>
    %55 = vector.extract_strided_slice %32 {offsets = [0, 160], sizes = [8, 256], strides = [1, 1]} : vector<8x512xbf16> to vector<8x256xbf16>
    %56 = vector.extract_strided_slice %32 {offsets = [0, 161], sizes = [8, 256], strides = [1, 1]} : vector<8x512xbf16> to vector<8x256xbf16>
    %57 = vector.extract_strided_slice %32 {offsets = [0, 162], sizes = [8, 256], strides = [1, 1]} : vector<8x512xbf16> to vector<8x256xbf16>
    %58 = tpu.concatenate %33, %34, %35, %36, %37, %38, %39, %40, %41, %42, %43, %44, %45, %46, %47, %48 in 0 : vector<8x256xbf16>, vector<8x256xbf16>, vector<8x256xbf16>, vector<8x256xbf16>, vector<8x256xbf16>, vector<8x256xbf16>, vector<8x256xbf16>, vector<8x256xbf16>, vector<8x256xbf16>, vector<8x256xbf16>, vector<8x256xbf16>, vector<8x256xbf16>, vector<8x256xbf16>, vector<8x256xbf16>, vector<8x256xbf16>, vector<8x256xbf16> -> vector<128x256xbf16>
    %59 = tpu.concatenate %49, %50, %51, %52, %53, %54, %55, %56, %57 in 0 : vector<8x256xbf16>, vector<8x256xbf16>, vector<8x256xbf16>, vector<8x256xbf16>, vector<8x256xbf16>, vector<8x256xbf16>, vector<8x256xbf16>, vector<8x256xbf16>, vector<8x256xbf16> -> vector<72x256xbf16>
    %60 = tpu.concatenate %58, %59 in 0 : vector<128x256xbf16>, vector<72x256xbf16> -> vector<200x256xbf16>
    %61 = arith.mulf %60, %29 : vector<200x256xbf16>
    %cst_13 = arith.constant 1.000000e+00 : bf16
    %62 = vector.broadcast %cst_13 : bf16 to vector<1x256xbf16>
    %63 = tpu.concatenate %61, %62 in 0 : vector<200x256xbf16>, vector<1x256xbf16> -> vector<201x256xbf16>
    %c0_14 = arith.constant 0 : index
    %c0_15 = arith.constant 0 : index
    %64 = vector.load %arg3[%c0_14, %c0_15] : memref<8x201xbf16, #tpu.memory_space<vmem>>, vector<8x201xbf16>
    %cst_16 = arith.constant dense<0.000000e+00> : vector<8x256xf32>
    %65 = tpu.matmul %64, %63, %cst_16 {dimension_numbers = #tpu.dot_dimension_numbers<[1], [0], [0], [1], [0, 0, 1, 1], [], []>} : vector<8x201xbf16>, vector<201x256xbf16>, vector<8x256xf32> -> vector<8x256xf32>
    %cst_17 = arith.constant 0.000000e+00 : f32
    %66 = vector.broadcast %cst_17 : f32 to vector<8x256xf32>
    %67 = arith.maximumf %65, %66 : vector<8x256xf32>
    %68 = arith.truncf %67 : vector<8x256xf32> to vector<8x256xbf16>
    %cst_18 = arith.constant 0.000000e+00 : bf16
    %69 = vector.broadcast %cst_18 : bf16 to vector<8x128xbf16>
    %70 = tpu.concatenate %69, %68, %69 in 1 : vector<8x128xbf16>, vector<8x256xbf16>, vector<8x128xbf16> -> vector<8x512xbf16>
    %71 = vector.extract_strided_slice %70 {offsets = [0, 94], sizes = [8, 256], strides = [1, 1]} : vector<8x512xbf16> to vector<8x256xbf16>
    %72 = vector.extract_strided_slice %70 {offsets = [0, 95], sizes = [8, 256], strides = [1, 1]} : vector<8x512xbf16> to vector<8x256xbf16>
    %73 = vector.extract_strided_slice %70 {offsets = [0, 96], sizes = [8, 256], strides = [1, 1]} : vector<8x512xbf16> to vector<8x256xbf16>
    %74 = vector.extract_strided_slice %70 {offsets = [0, 97], sizes = [8, 256], strides = [1, 1]} : vector<8x512xbf16> to vector<8x256xbf16>
    %75 = vector.extract_strided_slice %70 {offsets = [0, 98], sizes = [8, 256], strides = [1, 1]} : vector<8x512xbf16> to vector<8x256xbf16>
    %76 = vector.extract_strided_slice %70 {offsets = [0, 110], sizes = [8, 256], strides = [1, 1]} : vector<8x512xbf16> to vector<8x256xbf16>
    %77 = vector.extract_strided_slice %70 {offsets = [0, 111], sizes = [8, 256], strides = [1, 1]} : vector<8x512xbf16> to vector<8x256xbf16>
    %78 = vector.extract_strided_slice %70 {offsets = [0, 112], sizes = [8, 256], strides = [1, 1]} : vector<8x512xbf16> to vector<8x256xbf16>
    %79 = vector.extract_strided_slice %70 {offsets = [0, 113], sizes = [8, 256], strides = [1, 1]} : vector<8x512xbf16> to vector<8x256xbf16>
    %80 = vector.extract_strided_slice %70 {offsets = [0, 114], sizes = [8, 256], strides = [1, 1]} : vector<8x512xbf16> to vector<8x256xbf16>
    %81 = vector.extract_strided_slice %70 {offsets = [0, 126], sizes = [8, 256], strides = [1, 1]} : vector<8x512xbf16> to vector<8x256xbf16>
    %82 = vector.extract_strided_slice %70 {offsets = [0, 127], sizes = [8, 256], strides = [1, 1]} : vector<8x512xbf16> to vector<8x256xbf16>
    %83 = vector.extract_strided_slice %70 {offsets = [0, 128], sizes = [8, 256], strides = [1, 1]} : vector<8x512xbf16> to vector<8x256xbf16>
    %84 = vector.extract_strided_slice %70 {offsets = [0, 129], sizes = [8, 256], strides = [1, 1]} : vector<8x512xbf16> to vector<8x256xbf16>
    %85 = vector.extract_strided_slice %70 {offsets = [0, 130], sizes = [8, 256], strides = [1, 1]} : vector<8x512xbf16> to vector<8x256xbf16>
    %86 = vector.extract_strided_slice %70 {offsets = [0, 142], sizes = [8, 256], strides = [1, 1]} : vector<8x512xbf16> to vector<8x256xbf16>
    %87 = vector.extract_strided_slice %70 {offsets = [0, 143], sizes = [8, 256], strides = [1, 1]} : vector<8x512xbf16> to vector<8x256xbf16>
    %88 = vector.extract_strided_slice %70 {offsets = [0, 144], sizes = [8, 256], strides = [1, 1]} : vector<8x512xbf16> to vector<8x256xbf16>
    %89 = vector.extract_strided_slice %70 {offsets = [0, 145], sizes = [8, 256], strides = [1, 1]} : vector<8x512xbf16> to vector<8x256xbf16>
    %90 = vector.extract_strided_slice %70 {offsets = [0, 146], sizes = [8, 256], strides = [1, 1]} : vector<8x512xbf16> to vector<8x256xbf16>
    %91 = vector.extract_strided_slice %70 {offsets = [0, 158], sizes = [8, 256], strides = [1, 1]} : vector<8x512xbf16> to vector<8x256xbf16>
    %92 = vector.extract_strided_slice %70 {offsets = [0, 159], sizes = [8, 256], strides = [1, 1]} : vector<8x512xbf16> to vector<8x256xbf16>
    %93 = vector.extract_strided_slice %70 {offsets = [0, 160], sizes = [8, 256], strides = [1, 1]} : vector<8x512xbf16> to vector<8x256xbf16>
    %94 = vector.extract_strided_slice %70 {offsets = [0, 161], sizes = [8, 256], strides = [1, 1]} : vector<8x512xbf16> to vector<8x256xbf16>
    %95 = vector.extract_strided_slice %70 {offsets = [0, 162], sizes = [8, 256], strides = [1, 1]} : vector<8x512xbf16> to vector<8x256xbf16>
    %96 = tpu.concatenate %71, %72, %73, %74, %75, %76, %77, %78, %79, %80, %81, %82, %83, %84, %85, %86 in 0 : vector<8x256xbf16>, vector<8x256xbf16>, vector<8x256xbf16>, vector<8x256xbf16>, vector<8x256xbf16>, vector<8x256xbf16>, vector<8x256xbf16>, vector<8x256xbf16>, vector<8x256xbf16>, vector<8x256xbf16>, vector<8x256xbf16>, vector<8x256xbf16>, vector<8x256xbf16>, vector<8x256xbf16>, vector<8x256xbf16>, vector<8x256xbf16> -> vector<128x256xbf16>
    %97 = tpu.concatenate %87, %88, %89, %90, %91, %92, %93, %94, %95 in 0 : vector<8x256xbf16>, vector<8x256xbf16>, vector<8x256xbf16>, vector<8x256xbf16>, vector<8x256xbf16>, vector<8x256xbf16>, vector<8x256xbf16>, vector<8x256xbf16>, vector<8x256xbf16> -> vector<72x256xbf16>
    %98 = tpu.concatenate %96, %97 in 0 : vector<128x256xbf16>, vector<72x256xbf16> -> vector<200x256xbf16>
    %99 = arith.mulf %98, %29 : vector<200x256xbf16>
    %cst_19 = arith.constant 1.000000e+00 : bf16
    %100 = vector.broadcast %cst_19 : bf16 to vector<1x256xbf16>
    %101 = tpu.concatenate %99, %100 in 0 : vector<200x256xbf16>, vector<1x256xbf16> -> vector<201x256xbf16>
    %c0_20 = arith.constant 0 : index
    %c0_21 = arith.constant 0 : index
    %102 = vector.load %arg4[%c0_20, %c0_21] : memref<8x201xbf16, #tpu.memory_space<vmem>>, vector<8x201xbf16>
    %cst_22 = arith.constant dense<0.000000e+00> : vector<8x256xf32>
    %103 = tpu.matmul %102, %101, %cst_22 {dimension_numbers = #tpu.dot_dimension_numbers<[1], [0], [0], [1], [0, 0, 1, 1], [], []>} : vector<8x201xbf16>, vector<201x256xbf16>, vector<8x256xf32> -> vector<8x256xf32>
    %104 = tpu.concatenate %1, %103 in 1 : vector<8x256xf32>, vector<8x256xf32> -> vector<8x512xf32>
    %105 = arith.truncf %104 : vector<8x512xf32> to vector<8x512xbf16>
    %c0_23 = arith.constant 0 : index
    %c0_24 = arith.constant 0 : index
    %106 = vector.load %arg5[%c0_23, %c0_24] : memref<512x256xbf16, #tpu.memory_space<vmem>>, vector<512x256xbf16>
    %cst_25 = arith.constant dense<0.000000e+00> : vector<8x256xf32>
    %107 = tpu.matmul %105, %106, %cst_25 {dimension_numbers = #tpu.dot_dimension_numbers<[1], [0], [0], [1], [0, 0, 1, 1], [], []>} : vector<8x512xbf16>, vector<512x256xbf16>, vector<8x256xf32> -> vector<8x256xf32>
    %cst_26 = arith.constant dense<0x7F800000> : vector<8xf32>
    %108 = vector.multi_reduction <minimumf>, %107, %cst_26 [1] : vector<8x256xf32> to vector<8xf32>
    %109 = vector.shape_cast %108 : vector<8xf32> to vector<8x1xf32>
    %cst_27 = arith.constant dense<0xFF800000> : vector<8xf32>
    %110 = vector.multi_reduction <maximumf>, %107, %cst_27 [1] : vector<8x256xf32> to vector<8xf32>
    %111 = vector.shape_cast %110 : vector<8xf32> to vector<8x1xf32>
    %112 = vector.broadcast %109 : vector<8x1xf32> to vector<8x256xf32>
    %113 = arith.subf %107, %112 : vector<8x256xf32>
    %114 = arith.subf %111, %109 : vector<8x1xf32>
    %cst_28 = arith.constant 9.99999993E-9 : f32
    %115 = vector.broadcast %cst_28 : f32 to vector<8x1xf32>
    %116 = arith.addf %114, %115 : vector<8x1xf32>
    %117 = vector.broadcast %116 : vector<8x1xf32> to vector<8x256xf32>
    %118 = arith.divf %113, %117 : vector<8x256xf32>
    %c0_29 = arith.constant 0 : index
    %c0_30 = arith.constant 0 : index
    %c0_31 = arith.constant 0 : index
    %119 = vector.load %arg7[%c0_29, %c0_30, %c0_31] : memref<1x8x256xf32, #tpu.memory_space<vmem>>, vector<1x8x256xf32>
    %120 = vector.shape_cast %119 : vector<1x8x256xf32> to vector<8x256xf32>
    %121 = vector.shape_cast %118 : vector<8x256xf32> to vector<1x8x256xf32>
    tpu.vector_store %arg7[%c0_29, %c0_30, %c0_31], %121 {strides = array<i32>} : memref<1x8x256xf32, #tpu.memory_space<vmem>>, vector<1x8x256xf32>,
    return
  }
  func.func @transform_0(%arg0: i32) -> (i32, i32, i32) {
    %c0_i32 = arith.constant 0 : i32
    %c0_i32_0 = arith.constant 0 : i32
    %c0_i32_1 = arith.constant 0 : i32
    return %arg0, %c0_i32, %c0_i32_0 : i32, i32, i32
  }
  func.func @transform_1(%arg0: i32) -> (i32, i32, i32) {
    %c0_i32 = arith.constant 0 : i32
    %c0_i32_0 = arith.constant 0 : i32
    %c0_i32_1 = arith.constant 0 : i32
    return %arg0, %c0_i32, %c0_i32_0 : i32, i32, i32
  }
  func.func @transform_2(%arg0: i32) -> (i32, i32) {
    %c0_i32 = arith.constant 0 : i32
    %c0_i32_0 = arith.constant 0 : i32
    %c0_i32_1 = arith.constant 0 : i32
    return %c0_i32, %c0_i32_0 : i32, i32
  }
  func.func @transform_3(%arg0: i32) -> (i32, i32) {
    %c0_i32 = arith.constant 0 : i32
    %c0_i32_0 = arith.constant 0 : i32
    %c0_i32_1 = arith.constant 0 : i32
    return %c0_i32, %c0_i32_0 : i32, i32
  }
  func.func @transform_4(%arg0: i32) -> (i32, i32) {
    %c0_i32 = arith.constant 0 : i32
    %c0_i32_0 = arith.constant 0 : i32
    %c0_i32_1 = arith.constant 0 : i32
    return %c0_i32, %c0_i32_0 : i32, i32
  }
  func.func @transform_5(%arg0: i32) -> (i32, i32) {
    %c0_i32 = arith.constant 0 : i32
    %c0_i32_0 = arith.constant 0 : i32
    %c0_i32_1 = arith.constant 0 : i32
    return %c0_i32, %c0_i32_0 : i32, i32
  }
  func.func @transform_6(%arg0: i32) -> (i32, i32, i32) {
    %c0_i32 = arith.constant 0 : i32
    %c0_i32_0 = arith.constant 0 : i32
    %c0_i32_1 = arith.constant 0 : i32
    return %arg0, %c0_i32, %c0_i32_0 : i32, i32, i32
  }
}

</mosaic_0001>

<llo_original>
// kernel: energy_mixup.1
$region0: #{energy_mixup.1}
  #allocation0 [shape = 'u32[]', space=smem, size = 0x4, offset = 0x4, fixed_abs, tag = 'smem constant byte address 0x4 - core index']
  #allocation1 [shape = 'u32[144,128]{1,0:T(1,128)}', space=vmem, size = 0x12000, scoped, tag = 'internal scratch']
  %s0 = inlined_call_operand.vmem [shape: f32[4,8,256], index: 0, kind: input, shape index: {}]
  %s1 = inlined_call_operand.vmem [shape: f32[4,8,256], index: 1, kind: input, shape index: {}]
  %s2 = inlined_call_operand.vmem [shape: bf16[8,201], index: 2, kind: input, shape index: {}]
  %s3 = inlined_call_operand.vmem [shape: bf16[8,201], index: 3, kind: input, shape index: {}]
  %s4 = inlined_call_operand.vmem [shape: bf16[512,256], index: 4, kind: input, shape index: {}]
  %s5 = inlined_call_operand.vmem [shape: bf16[200,256], index: 5, kind: input, shape index: {}]
  %s6 = inlined_call_operand.vmem [shape: f32[4,8,256], index: 6, kind: output, shape index: {}]
  %s7 = sld [smem:[#allocation0]]
  $region57: #{energy_mixup.1} parent=0
    _
  %s9 = ssub.s32 1, %s7
  %s10 = scalar_select 0, %s9, %s7
  loop: start=0, step=1, limit=6
  $region2: #{energy_mixup.1} parent=0 // loop_pre_header
    _
  $region3: #{energy_mixup.1} parent=0 // loop_header
    %s12 = sphi 0, %s16
    %p13 = scmp.ge.s32.totalorder %s12, 6
    %s22 = sphi 0, %s24
    %s25 = sphi 0, %s22
    %s26 = sphi 0, %s25
    %s42 = sphi 0, %s26
    %s48 = sphi 0, %s50
    %s51 = sphi 0, %s48
    %s52 = sphi 0, %s51
    %s68 = sphi 0, %s52
    %s72 = sphi 0, %s72
    %s74 = sphi 0, %s72
    %s75 = sphi 0, %s74
    %s89 = sphi 0, %s75
    %s93 = sphi 0, %s93
    %s95 = sphi 0, %s93
    %s96 = sphi 0, %s95
    %s110 = sphi 0, %s96
    %s114 = sphi 0, %s114
    %s116 = sphi 0, %s114
    %s117 = sphi 0, %s116
    %s131 = sphi 0, %s117
    %s135 = sphi 0, %s135
    %s137 = sphi 0, %s135
    %s138 = sphi 0, %s137
    %s152 = sphi 0, %s138
    %s158 = sphi 0, %s160
    %s161 = sphi 0, %s158
    %s162 = sphi 0, %s161
    %s178 = sphi 0, %s162
  $region4: #{energy_mixup.1} parent=0 // loop_header_branch
    %15 = sbr.rel (%p13) target = $region8
  $region5: #{energy_mixup.1} parent=0 // loop_body
    %s17 = ssub.s32 %s12, 1
    %s18 = ssub.s32 %s12, 2
    %s19 = sadd.s32 %s12, 1
    %s20 = ssub.s32 %s12, %s19
    %p21 = scmp.eq.s32.totalorder %s20, 0
    %s23 = sadd.s32 %s22, 1
    %s24 = scalar_select %p21, %s22, %s23
    %p27 = pneg %p21
    %p28 = scmp.eq.s32.totalorder %s12, 3
    %p29 = por %p27, %p28
    %p30 = scmp.ne.s32.totalorder %s22, %s25
    %p31 = scmp.eq.s32.totalorder %s12, 0
    %p32 = por %p30, %p31
    %p33 = scmp.ne.s32.totalorder %s22, %s25
    %p34 = scmp.eq.s32.totalorder %s17, 3
    %p35 = por %p33, %p34
    %p36 = scmp.ne.s32.totalorder %s25, %s26
    %p37 = scmp.eq.s32.totalorder %s17, 0
    %p38 = por %p36, %p37
    %p39 = scmp.ne.s32.totalorder %s25, %s26
    %p40 = scmp.eq.s32.totalorder %s18, 3
    %p41 = por %p39, %p40
    %p43 = scmp.ne.s32.totalorder %s26, %s42
    %p44 = scmp.eq.s32.totalorder %s18, 0
    %p45 = por %p43, %p44
    %s46 = ssub.s32 %s12, %s19
    %p47 = scmp.eq.s32.totalorder %s46, 0
    %s49 = sadd.s32 %s48, 1
    %s50 = scalar_select %p47, %s48, %s49
    %p53 = pneg %p47
    %p54 = scmp.eq.s32.totalorder %s12, 3
    %p55 = por %p53, %p54
    %p56 = scmp.ne.s32.totalorder %s48, %s51
    %p57 = scmp.eq.s32.totalorder %s12, 0
    %p58 = por %p56, %p57
    %p59 = scmp.ne.s32.totalorder %s48, %s51
    %p60 = scmp.eq.s32.totalorder %s17, 3
    %p61 = por %p59, %p60
    %p62 = scmp.ne.s32.totalorder %s51, %s52
    %p63 = scmp.eq.s32.totalorder %s17, 0
    %p64 = por %p62, %p63
    %p65 = scmp.ne.s32.totalorder %s51, %s52
    %p66 = scmp.eq.s32.totalorder %s18, 3
    %p67 = por %p65, %p66
    %p69 = scmp.ne.s32.totalorder %s52, %s68
    %p70 = scmp.eq.s32.totalorder %s18, 0
    %p71 = por %p69, %p70
    %s73 = sadd.s32 %s72, 1
    %p76 = scmp.eq.s32.totalorder %s12, 3
    %p77 = scmp.ne.s32.totalorder %s72, %s74
    %p78 = scmp.eq.s32.totalorder %s12, 0
    %p79 = por %p77, %p78
    %p80 = scmp.ne.s32.totalorder %s72, %s74
    %p81 = scmp.eq.s32.totalorder %s17, 3
    %p82 = por %p80, %p81
    %p83 = scmp.ne.s32.totalorder %s74, %s75
    %p84 = scmp.eq.s32.totalorder %s17, 0
    %p85 = por %p83, %p84
    %p86 = scmp.ne.s32.totalorder %s74, %s75
    %p87 = scmp.eq.s32.totalorder %s18, 3
    %p88 = por %p86, %p87
    %p90 = scmp.ne.s32.totalorder %s75, %s89
    %p91 = scmp.eq.s32.totalorder %s18, 0
    %p92 = por %p90, %p91
    %s94 = sadd.s32 %s93, 1
    %p97 = scmp.eq.s32.totalorder %s12, 3
    %p98 = scmp.ne.s32.totalorder %s93, %s95
    %p99 = scmp.eq.s32.totalorder %s12, 0
    %p100 = por %p98, %p99
    %p101 = scmp.ne.s32.totalorder %s93, %s95
    %p102 = scmp.eq.s32.totalorder %s17, 3
    %p103 = por %p101, %p102
    %p104 = scmp.ne.s32.totalorder %s95, %s96
    %p105 = scmp.eq.s32.totalorder %s17, 0
    %p106 = por %p104, %p105
    %p107 = scmp.ne.s32.totalorder %s95, %s96
    %p108 = scmp.eq.s32.totalorder %s18, 3
    %p109 = por %p107, %p108
    %p111 = scmp.ne.s32.totalorder %s96, %s110
    %p112 = scmp.eq.s32.totalorder %s18, 0
    %p113 = por %p111, %p112
    %s115 = sadd.s32 %s114, 1
    %p118 = scmp.eq.s32.totalorder %s12, 3
    %p119 = scmp.ne.s32.totalorder %s114, %s116
    %p120 = scmp.eq.s32.totalorder %s12, 0
    %p121 = por %p119, %p120
    %p122 = scmp.ne.s32.totalorder %s114, %s116
    %p123 = scmp.eq.s32.totalorder %s17, 3
    %p124 = por %p122, %p123
    %p125 = scmp.ne.s32.totalorder %s116, %s117
    %p126 = scmp.eq.s32.totalorder %s17, 0
    %p127 = por %p125, %p126
    %p128 = scmp.ne.s32.totalorder %s116, %s117
    %p129 = scmp.eq.s32.totalorder %s18, 3
    %p130 = por %p128, %p129
    %p132 = scmp.ne.s32.totalorder %s117, %s131
    %p133 = scmp.eq.s32.totalorder %s18, 0
    %p134 = por %p132, %p133
    %s136 = sadd.s32 %s135, 1
    %p139 = scmp.eq.s32.totalorder %s12, 3
    %p140 = scmp.ne.s32.totalorder %s135, %s137
    %p141 = scmp.eq.s32.totalorder %s12, 0
    %p142 = por %p140, %p141
    %p143 = scmp.ne.s32.totalorder %s135, %s137
    %p144 = scmp.eq.s32.totalorder %s17, 3
    %p145 = por %p143, %p144
    %p146 = scmp.ne.s32.totalorder %s137, %s138
    %p147 = scmp.eq.s32.totalorder %s17, 0
    %p148 = por %p146, %p147
    %p149 = scmp.ne.s32.totalorder %s137, %s138
    %p150 = scmp.eq.s32.totalorder %s18, 3
    %p151 = por %p149, %p150
    %p153 = scmp.ne.s32.totalorder %s138, %s152
    %p154 = scmp.eq.s32.totalorder %s18, 0
    %p155 = por %p153, %p154
    %s156 = ssub.s32 %s12, %s19
    %p157 = scmp.eq.s32.totalorder %s156, 0
    %s159 = sadd.s32 %s158, 1
    %s160 = scalar_select %p157, %s158, %s159
    %p163 = pneg %p157
    %p164 = scmp.eq.s32.totalorder %s12, 3
    %p165 = por %p163, %p164
    %p166 = scmp.ne.s32.totalorder %s158, %s161
    %p167 = scmp.eq.s32.totalorder %s12, 0
    %p168 = por %p166, %p167
    %p169 = scmp.ne.s32.totalorder %s158, %s161
    %p170 = scmp.eq.s32.totalorder %s17, 3
    %p171 = por %p169, %p170
    %p172 = scmp.ne.s32.totalorder %s161, %s162
    %p173 = scmp.eq.s32.totalorder %s17, 0
    %p174 = por %p172, %p173
    %p175 = scmp.ne.s32.totalorder %s161, %s162
    %p176 = scmp.eq.s32.totalorder %s18, 3
    %p177 = por %p175, %p176
    %p179 = scmp.ne.s32.totalorder %s162, %s178
    %p180 = scmp.eq.s32.totalorder %s18, 0
    %p181 = por %p179, %p180
    %p182 = scmp.le.s32.totalorder 1, %s12
    %p183 = scmp.lt.s32.totalorder %s12, 5
    %p184 = pnand %p182, %p183
    %p185 = pneg %p184
    // Predicated region
    $region9: #{energy_mixup.1} parent=5 // pred_check
      _
    $region10: #{energy_mixup.1} parent=5 // pred_check_branch
      %187 = sbr.rel (%p184) target = $region12
    $region11: #{energy_mixup.1} parent=5 // pred_region
      %s188 = ssub.s32 %s12, 1
      // Predicated region
      $region13: #{energy_mixup.1} parent=11 // pred_check
        %p189 = pneg %p85
      $region14: #{energy_mixup.1} parent=11 // pred_check_branch
        %191 = sbr.rel (%p189) target = $region16
      $region15: #{energy_mixup.1} parent=11 // pred_region
        _
      $region16: #{energy_mixup.1} parent=11 // pred_fallthru
        _
      // Predicated region
      $region17: #{energy_mixup.1} parent=11 // pred_check
        %p192 = pneg %p106
      $region18: #{energy_mixup.1} parent=11 // pred_check_branch
        %194 = sbr.rel (%p192) target = $region20
      $region19: #{energy_mixup.1} parent=11 // pred_region
        _
      $region20: #{energy_mixup.1} parent=11 // pred_fallthru
        _
      // Predicated region
      $region21: #{energy_mixup.1} parent=11 // pred_check
        %p195 = pneg %p127
      $region22: #{energy_mixup.1} parent=11 // pred_check_branch
        %197 = sbr.rel (%p195) target = $region24
      $region23: #{energy_mixup.1} parent=11 // pred_region
        _
      $region24: #{energy_mixup.1} parent=11 // pred_fallthru
        _
      // Predicated region
      $region25: #{energy_mixup.1} parent=11 // pred_check
        %p198 = pneg %p148
      $region26: #{energy_mixup.1} parent=11 // pred_check_branch
        %200 = sbr.rel (%p198) target = $region28
      $region27: #{energy_mixup.1} parent=11 // pred_region
        _
      $region28: #{energy_mixup.1} parent=11 // pred_fallthru
        _
    $region12: #{energy_mixup.1} parent=5 // pred_fallthru
      _
    %p201 = scmp.lt.s32.totalorder %s12, 4
    // Predicated region
    $region29: #{energy_mixup.1} parent=5 // pred_check
      %p202 = pneg %p201
    $region30: #{energy_mixup.1} parent=5 // pred_check_branch
      %204 = sbr.rel (%p202) target = $region32
    $region31: #{energy_mixup.1} parent=5 // pred_region
      // Predicated region
      $region33: #{energy_mixup.1} parent=31 // pred_check
        %p205 = pneg %p32
      $region34: #{energy_mixup.1} parent=31 // pred_check_branch
        %207 = sbr.rel (%p205) target = $region36
      $region35: #{energy_mixup.1} parent=31 // pred_region
        %p208 = scmp.lt.s32.totalorder %s12, 3
        %s209 = scalar_select %p208, %s12, 3
        %s210 = smul.addr %s209, 2
        %s211 = smul.addr %s210, 8
        %s212 = scalar_lea.vmem %s0, %s211
      $region36: #{energy_mixup.1} parent=31 // pred_fallthru
        _
      // Predicated region
      $region37: #{energy_mixup.1} parent=31 // pred_check
        %p213 = pneg %p58
      $region38: #{energy_mixup.1} parent=31 // pred_check_branch
        %215 = sbr.rel (%p213) target = $region40
      $region39: #{energy_mixup.1} parent=31 // pred_region
        %p216 = scmp.lt.s32.totalorder %s12, 3
        %s217 = scalar_select %p216, %s12, 3
        %s218 = smul.addr %s217, 2
        %s219 = smul.addr %s218, 8
        %s220 = scalar_lea.vmem %s1, %s219
      $region40: #{energy_mixup.1} parent=31 // pred_fallthru
        _
    $region32: #{energy_mixup.1} parent=5 // pred_fallthru
      _
    %p221 = scmp.le.s32.totalorder 1, %s12
    %p222 = scmp.lt.s32.totalorder %s12, 5
    %p223 = pnand %p221, %p222
    %p224 = pneg %p223
    // Predicated region
    $region41: #{energy_mixup.1} parent=5 // pred_check
      _
    $region42: #{energy_mixup.1} parent=5 // pred_check_branch
      %226 = sbr.rel (%p223) target = $region44
    $region43: #{energy_mixup.1} parent=5 // pred_region
      %s227 = ssub.s32 %s12, 1
      %p228 = scmp.lt.s32.totalorder %s17, 3
      %s229 = scalar_select %p228, %s17, 3
      %s230 = smul.addr %s229, 2
      %s231 = smul.addr %s230, 8
      %s232 = scalar_lea.vmem %s0, %s231
      %p233 = pneg %p38
      %p234 = pneg %p35
      %p235 = scmp.lt.s32.totalorder %s17, 3
      %s236 = scalar_select %p235, %s17, 3
      %s237 = smul.addr %s236, 2
      %s238 = smul.addr %s237, 8
      %s239 = scalar_lea.vmem %s1, %s238
      %p240 = pneg %p64
      %p241 = pneg %p61
      %p242 = pneg %p85
      %p243 = pneg %p82
      %p244 = pneg %p106
      %p245 = pneg %p103
      %p246 = pneg %p127
      %p247 = pneg %p124
      %p248 = pneg %p148
      %p249 = pneg %p145
      %p250 = pneg %p174
      %p251 = pneg %p171
      %p252 = scmp.lt.s32.totalorder %s17, 3
      %s253 = scalar_select %p252, %s17, 3
      %s254 = smul.addr %s253, 2
      %s255 = smul.addr %s254, 8
      %s256 = scalar_lea.vmem %s6, %s255
      %p257 = scmp.lt.s32.totalorder %s17, 3
      %s258 = scalar_select %p257, %s17, 3
      %s259 = smul.addr %s258, 2
      %s260 = smul.addr %s259, 8
      %s261 = scalar_lea.vmem %s0, %s260
      %p262 = scmp.lt.s32.totalorder %s17, 3
      %s263 = scalar_select %p262, %s17, 3
      %s264 = smul.addr %s263, 2
      %s265 = smul.addr %s264, 8
      %s266 = scalar_lea.vmem %s1, %s265
      %p267 = scmp.lt.s32.totalorder %s17, 3
      %s268 = scalar_select %p267, %s17, 3
      %s269 = smul.addr %s268, 2
      %s270 = smul.addr %s269, 8
      %s271 = scalar_lea.vmem %s6, %s270
      %v274 = vld [vmem:[%s261] sm:$0xff]
      %v275 = vld [vmem:[%s261 + $0x8] sm:$0xff]
      %v276 = vld [vmem:[%s266] sm:$0xff]
      %v277 = vld [vmem:[%s266 + $0x8] sm:$0xff]
      %vm278 = vcmask 1042432
      %v279 = vsel %vm278, %v276, inf
      %v280 = vsel %vm278, %v277, inf
      %v281 = vmin.f32 %v279, %v280
      %282 = vmin.xlane.f32.xlu0 %v281
      %v283 = vpop.xlane.xlu0 %282
      %v284 = vrot.slane %v283, 4
      %v285 = vmin.f32 %v283, %v284
      %v286 = vrot.slane %v285, 2
      %v287 = vmin.f32 %v285, %v286
      %v288 = vrot.slane %v287, 1
      %v289 = vmin.f32 %v287, %v288
      %s290 = vtos %v289
      %v291 = vsel %vm278, %v276, -inf
      %v292 = vsel %vm278, %v277, -inf
      %v293 = vmax.f32 %v291, %v292
      %294 = vmax.xlane.f32.xlu0 %v293
      %v295 = vpop.xlane.xlu0 %294
      %v296 = vrot.slane %v295, 4
      %v297 = vmax.f32 %v295, %v296
      %v298 = vrot.slane %v297, 2
      %v299 = vmax.f32 %v297, %v298
      %v300 = vrot.slane %v299, 1
      %v301 = vmax.f32 %v299, %v300
      %s302 = vtos %v301
      %s303 = ssub.f32 %s302, %s290
      %v304 = vsel %vm278, %v274, 0.0
      %v305 = vsel %vm278, %v275, 0.0
      %v306 = vadd.f32 %v304, %v305
      %307 = vadd.xlane.f32.xlu0 %v306
      %v308 = vpop.xlane.xlu0 %307
      %v309 = vrot.slane %v308, 4
      %v310 = vadd.f32 %v308, %v309
      %v311 = vrot.slane %v310, 2
      %v312 = vadd.f32 %v310, %v311
      %v313 = vrot.slane %v312, 1
      %v314 = vadd.f32 %v312, %v313
      %s315 = vtos %v314
      %v316 = vrcp.pop 768.0
      %s317 = vtos %v316
      %s318 = smul.f32 %s315, %s317
      %v319 = vstv %s290
      %v320 = vsub.f32 %v276, %v319
      %v321 = vsub.f32 %v277, %v319
      %s322 = sadd.f32 %s303, 1e-08
      %v323 = vstv %s322
      %v324 = vrcp.pop %v323
      %v325 = vmul.f32 %v320, %v324
      %v326 = vmul.f32 %v321, %v324
      %s327 = smul.f32 %s318, 0.1
      %v328 = vstv %s327
      %v329 = vmul.f32 %v325, %v328
      %v330 = vmul.f32 %v326, %v328
      %v331 = vadd.f32 %v274, %v329
      %v332 = vadd.f32 %v275, %v330
      %v333 = vld [vmem:[%s5] sm:$0xff]
      %v334 = vld [vmem:[%s5 + $0x8] sm:$0xff]
      %v335 = vld [vmem:[%s5 + $0x10] sm:$0xff]
      %v336 = vld [vmem:[%s5 + $0x18] sm:$0xff]
      %v337 = vld [vmem:[%s5 + $0x20] sm:$0xff]
      %v338 = vld [vmem:[%s5 + $0x28] sm:$0xff]
      %v339 = vld [vmem:[%s5 + $0x30] sm:$0xff]
      %v340 = vld [vmem:[%s5 + $0x38] sm:$0xff]
      %v341 = vld [vmem:[%s5 + $0x40] sm:$0xff]
      %v342 = vld [vmem:[%s5 + $0x48] sm:$0xff]
      %v343 = vld [vmem:[%s5 + $0x50] sm:$0xff]
      %v344 = vld [vmem:[%s5 + $0x58] sm:$0xff]
      %v345 = vld [vmem:[%s5 + $0x60] sm:$0xff]
      %v346 = vld [vmem:[%s5 + $0x68] sm:$0xff]
      %v347 = vld [vmem:[%s5 + $0x70] sm:$0xff]
      %v348 = vld [vmem:[%s5 + $0x78] sm:$0xff]
      %v349 = vld [vmem:[%s5 + $0x80] sm:$0xff]
      %v350 = vld [vmem:[%s5 + $0x88] sm:$0xff]
      %v351 = vld [vmem:[%s5 + $0x90] sm:$0xff]
      %v352 = vld [vmem:[%s5 + $0x98] sm:$0xff]
      %v353 = vld [vmem:[%s5 + $0xa0] sm:$0xff]
      %v354 = vld [vmem:[%s5 + $0xa8] sm:$0xff]
      %v355 = vld [vmem:[%s5 + $0xb0] sm:$0xff]
      %v356 = vld [vmem:[%s5 + $0xb8] sm:$0xff]
      %v357 = vld [vmem:[%s5 + $0xc0] sm:$0xff]
      %v358 = vpack.c.bf16 %v331, %v331
      %v359 = vpack.c.bf16 %v332, %v332
      %v363 = vrot.slane 0, 4
      %v364 = vrot.slane %v358, 4
      %v365 = vrot.slane %v359, 4
      %366 = vrot.lane.b32.xlu0 %v363, 127
      %v367 = vpop.permute.xlu0 %366
      %368 = vrot.lane.b32.xlu0 %v364, 127
      %v369 = vpop.permute.xlu0 %368
      %370 = vrot.lane.b32.xlu0 %v365, 127
      %v371 = vpop.permute.xlu0 %370
      %vm372 = vcmask 1039360
      %v373 = vsel %vm372, %v367, %v369
      %v374 = vsel %vm372, %v369, %v371
      %375 = vrot.lane.b32.xlu0 0, 126
      %v376 = vpop.permute.xlu0 %375
      %377 = vrot.lane.b32.xlu0 %v358, 126
      %v378 = vpop.permute.xlu0 %377
      %379 = vrot.lane.b32.xlu0 %v359, 126
      %v380 = vpop.permute.xlu0 %379
      %vm381 = vcmask 1031168
      %v382 = vsel %vm381, %v376, %v378
      %v383 = vsel %vm381, %v378, %v380
      %384 = vrot.lane.b32.xlu0 %v363, 125
      %v385 = vpop.permute.xlu0 %384
      %386 = vrot.lane.b32.xlu0 %v364, 125
      %v387 = vpop.permute.xlu0 %386
      %388 = vrot.lane.b32.xlu0 %v365, 125
      %v389 = vpop.permute.xlu0 %388
      %vm390 = vcmask 1022976
      %v391 = vsel %vm390, %v385, %v387
      %v392 = vsel %vm390, %v387, %v389
      %393 = vrot.lane.b32.xlu0 0, 124
      %v394 = vpop.permute.xlu0 %393
      %395 = vrot.lane.b32.xlu0 %v358, 124
      %v396 = vpop.permute.xlu0 %395
      %397 = vrot.lane.b32.xlu0 %v359, 124
      %v398 = vpop.permute.xlu0 %397
      %vm399 = vcmask 1014784
      %v400 = vsel %vm399, %v394, %v396
      %v401 = vsel %vm399, %v396, %v398
      %402 = vrot.lane.b32.xlu0 %v363, 112
      %v403 = vpop.permute.xlu0 %402
      %404 = vrot.lane.b32.xlu0 %v364, 112
      %v405 = vpop.permute.xlu0 %404
      %406 = vrot.lane.b32.xlu0 %v365, 112
      %v407 = vpop.permute.xlu0 %406
      %vm408 = vcmask 916480
      %v409 = vsel %vm408, %v403, %v405
      %v410 = vsel %vm408, %v405, %v407
      %411 = vrot.lane.b32.xlu0 0, 111
      %v412 = vpop.permute.xlu0 %411
      %413 = vrot.lane.b32.xlu0 %v358, 111
      %v414 = vpop.permute.xlu0 %413
      %415 = vrot.lane.b32.xlu0 %v359, 111
      %v416 = vpop.permute.xlu0 %415
      %vm417 = vcmask 908288
      %v418 = vsel %vm417, %v412, %v414
      %v419 = vsel %vm417, %v414, %v416
      %420 = vrot.lane.b32.xlu0 %v363, 110
      %v421 = vpop.permute.xlu0 %420
      %422 = vrot.lane.b32.xlu0 %v364, 110
      %v423 = vpop.permute.xlu0 %422
      %424 = vrot.lane.b32.xlu0 %v365, 110
      %v425 = vpop.permute.xlu0 %424
      %vm426 = vcmask 900096
      %v427 = vsel %vm426, %v421, %v423
      %v428 = vsel %vm426, %v423, %v425
      %429 = vrot.lane.b32.xlu0 0, 109
      %v430 = vpop.permute.xlu0 %429
      %431 = vrot.lane.b32.xlu0 %v358, 109
      %v432 = vpop.permute.xlu0 %431
      %433 = vrot.lane.b32.xlu0 %v359, 109
      %v434 = vpop.permute.xlu0 %433
      %vm435 = vcmask 891904
      %v436 = vsel %vm435, %v430, %v432
      %v437 = vsel %vm435, %v432, %v434
      %438 = vrot.lane.b32.xlu0 %v363, 108
      %v439 = vpop.permute.xlu0 %438
      %440 = vrot.lane.b32.xlu0 %v364, 108
      %v441 = vpop.permute.xlu0 %440
      %442 = vrot.lane.b32.xlu0 %v365, 108
      %v443 = vpop.permute.xlu0 %442
      %vm444 = vcmask 883712
      %v445 = vsel %vm444, %v439, %v441
      %v446 = vsel %vm444, %v441, %v443
      %447 = vrot.lane.b32.xlu0 0, 96
      %v448 = vpop.permute.xlu0 %447
      %449 = vrot.lane.b32.xlu0 %v358, 96
      %v450 = vpop.permute.xlu0 %449
      %451 = vrot.lane.b32.xlu0 %v359, 96
      %v452 = vpop.permute.xlu0 %451
      %vm453 = vcmask 785408
      %v454 = vsel %vm453, %v448, %v450
      %v455 = vsel %vm453, %v450, %v452
      %456 = vrot.lane.b32.xlu0 %v363, 95
      %v457 = vpop.permute.xlu0 %456
      %458 = vrot.lane.b32.xlu0 %v364, 95
      %v459 = vpop.permute.xlu0 %458
      %460 = vrot.lane.b32.xlu0 %v365, 95
      %v461 = vpop.permute.xlu0 %460
      %vm462 = vcmask 777216
      %v463 = vsel %vm462, %v457, %v459
      %v464 = vsel %vm462, %v459, %v461
      %465 = vrot.lane.b32.xlu0 %v358, 94
      %v466 = vpop.permute.xlu0 %465
      %467 = vrot.lane.b32.xlu0 %v359, 94
      %v468 = vpop.permute.xlu0 %467
      %vm469 = vcmask 769024
      %v470 = vsel %vm469, %v466, %v468
      %471 = vrot.lane.b32.xlu0 %v364, 93
      %v472 = vpop.permute.xlu0 %471
      %473 = vrot.lane.b32.xlu0 %v365, 93
      %v474 = vpop.permute.xlu0 %473
      %475 = vrot.lane.b32.xlu0 %v363, 93
      %v476 = vpop.permute.xlu0 %475
      %vm477 = vcmask 760832
      %v478 = vsel %vm477, %v472, %v474
      %v479 = vsel %vm477, %v474, %v476
      %480 = vrot.lane.b32.xlu0 %v358, 92
      %v481 = vpop.permute.xlu0 %480
      %482 = vrot.lane.b32.xlu0 %v359, 92
      %v483 = vpop.permute.xlu0 %482
      %484 = vrot.lane.b32.xlu0 0, 92
      %v485 = vpop.permute.xlu0 %484
      %vm486 = vcmask 752640
      %v487 = vsel %vm486, %v481, %v483
      %v488 = vsel %vm486, %v483, %v485
      %489 = vrot.lane.b32.xlu0 %v364, 80
      %v490 = vpop.permute.xlu0 %489
      %491 = vrot.lane.b32.xlu0 %v365, 80
      %v492 = vpop.permute.xlu0 %491
      %493 = vrot.lane.b32.xlu0 %v363, 80
      %v494 = vpop.permute.xlu0 %493
      %vm495 = vcmask 654336
      %v496 = vsel %vm495, %v490, %v492
      %v497 = vsel %vm495, %v492, %v494
      %vm498 = vcmask 1043456
      %v501 = vsel %vm498, 0, %v373
      %v505 = vsel %vm498, %v358, %v374
      %v509 = vsel %vm498, %v359, %v371
      %v513 = vsel %vm498, %v382, %v391
      %v517 = vsel %vm498, %v383, %v392
      %v521 = vsel %vm498, %v380, %v389
      %v525 = vsel %vm498, %v400, %v409
      %v529 = vsel %vm498, %v401, %v410
      %v533 = vsel %vm498, %v398, %v407
      %v537 = vsel %vm498, %v418, %v427
      %v541 = vsel %vm498, %v419, %v428
      %v545 = vsel %vm498, %v416, %v425
      %v549 = vsel %vm498, %v436, %v445
      %v553 = vsel %vm498, %v437, %v446
      %v557 = vsel %vm498, %v434, %v443
      %v561 = vsel %vm498, %v454, %v463
      %v565 = vsel %vm498, %v455, %v464
      %v569 = vsel %vm498, %v452, %v461
      %v573 = vsel %vm498, %v466, %v472
      %v577 = vsel %vm498, %v470, %v478
      %v581 = vsel %vm498, %v468, %v479
      %v585 = vsel %vm498, %v481, %v490
      %v589 = vsel %vm498, %v487, %v496
      %v593 = vsel %vm498, %v488, %v497
      %v595 = vsel %vm372, %v371, %v367
      %v596 = vsel %vm381, %v380, %v376
      %v597 = vsel %vm390, %v389, %v385
      %598 = vrot.lane.b32.xlu0 %v358, 113
      %v599 = vpop.permute.xlu0 %598
      %600 = vrot.lane.b32.xlu0 %v359, 113
      %v601 = vpop.permute.xlu0 %600
      %602 = vrot.lane.b32.xlu0 0, 113
      %v603 = vpop.permute.xlu0 %602
      %vm604 = vcmask 924672
      %v605 = vsel %vm604, %v599, %v601
      %v606 = vsel %vm604, %v601, %v603
      %v607 = vsel %vm408, %v407, %v403
      %v608 = vsel %vm417, %v416, %v412
      %v609 = vsel %vm426, %v425, %v421
      %v610 = vsel %vm435, %v434, %v430
      %v612 = vsel %vm498, %v359, %v595
      %v614 = vsel %vm498, 0, %v367
      %v617 = vsel %vm498, %v596, %v597
      %v620 = vsel %vm498, %v376, %v385
      %v622 = vsel %vm498, %v605, %v410
      %v625 = vsel %vm498, %v606, %v607
      %v628 = vsel %vm498, %v603, %v403
      %v631 = vsel %vm498, %v608, %v609
      %v634 = vsel %vm498, %v412, %v421
      %647 = vrot.lane.b32.xlu0 %v505, 79
      %v648 = vpop.permute.xlu0 %647
      %649 = vrot.lane.b32.xlu0 %v612, 79
      %v650 = vpop.permute.xlu0 %649
      %651 = vrot.lane.b32.xlu0 %v614, 79
      %v652 = vpop.permute.xlu0 %651
      %653 = vrot.lane.b32.xlu0 %v517, 79
      %v654 = vpop.permute.xlu0 %653
      %655 = vrot.lane.b32.xlu0 %v617, 79
      %v656 = vpop.permute.xlu0 %655
      %657 = vrot.lane.b32.xlu0 %v620, 79
      %v658 = vpop.permute.xlu0 %657
      %659 = vrot.lane.b32.xlu0 %v622, 79
      %v660 = vpop.permute.xlu0 %659
      %661 = vrot.lane.b32.xlu0 %v625, 79
      %v662 = vpop.permute.xlu0 %661
      %663 = vrot.lane.b32.xlu0 %v628, 79
      %v664 = vpop.permute.xlu0 %663
      %665 = vrot.lane.b32.xlu0 %v541, 79
      %v666 = vpop.permute.xlu0 %665
      %667 = vrot.lane.b32.xlu0 %v631, 79
      %v668 = vpop.permute.xlu0 %667
      %669 = vrot.lane.b32.xlu0 %v634, 79
      %v670 = vpop.permute.xlu0 %669
      %671 = vrot.lane.b32.xlu0 %v437, 79
      %v672 = vpop.permute.xlu0 %671
      %673 = vrot.lane.b32.xlu0 %v610, 79
      %v674 = vpop.permute.xlu0 %673
      %675 = vrot.lane.b32.xlu0 %v430, 79
      %v676 = vpop.permute.xlu0 %675
      %vm677 = vcmask 646144
      %v678 = vsel %vm677, %v648, %v650
      %v679 = vsel %vm677, %v650, %v652
      %v680 = vsel %vm677, %v654, %v656
      %v681 = vsel %vm677, %v656, %v658
      %v682 = vsel %vm677, %v660, %v662
      %v683 = vsel %vm677, %v662, %v664
      %v684 = vsel %vm677, %v666, %v668
      %v685 = vsel %vm677, %v668, %v670
      %v686 = vsel %vm677, %v672, %v674
      %v687 = vsel %vm677, %v674, %v676
      %v728 = vunpack.c.l.b16 %v333
      %v729 = vunpack.c.h.b16 %v333
      %v730 = vunpack.c.l.b16 %v334
      %v731 = vunpack.c.h.b16 %v334
      %v732 = vunpack.c.l.b16 %v335
      %v733 = vunpack.c.h.b16 %v335
      %v734 = vunpack.c.l.b16 %v336
      %v735 = vunpack.c.h.b16 %v336
      %v736 = vunpack.c.l.b16 %v337
      %v737 = vunpack.c.h.b16 %v337
      %v738 = vunpack.c.l.b16 %v338
      %v739 = vunpack.c.h.b16 %v338
      %v740 = vunpack.c.l.b16 %v339
      %v741 = vunpack.c.h.b16 %v339
      %v742 = vunpack.c.l.b16 %v340
      %v743 = vunpack.c.h.b16 %v340
      %v744 = vunpack.c.l.b16 %v341
      %v745 = vunpack.c.h.b16 %v341
      %v746 = vunpack.c.l.b16 %v342
      %v747 = vunpack.c.h.b16 %v342
      %v748 = vunpack.c.l.b16 %v343
      %v749 = vunpack.c.h.b16 %v343
      %v750 = vunpack.c.l.b16 %v344
      %v751 = vunpack.c.h.b16 %v344
      %v752 = vunpack.c.l.b16 %v345
      %v753 = vunpack.c.h.b16 %v345
      %v754 = vunpack.c.l.b16 %v346
      %v755 = vunpack.c.h.b16 %v346
      %v756 = vunpack.c.l.b16 %v347
      %v757 = vunpack.c.h.b16 %v347
      %v758 = vunpack.c.l.b16 %v348
      %v759 = vunpack.c.h.b16 %v348
      %v760 = vunpack.c.l.b16 %v349
      %v761 = vunpack.c.h.b16 %v349
      %v762 = vunpack.c.l.b16 %v350
      %v763 = vunpack.c.h.b16 %v350
      %v764 = vunpack.c.l.b16 %v351
      %v765 = vunpack.c.h.b16 %v351
      %v766 = vunpack.c.l.b16 %v352
      %v767 = vunpack.c.h.b16 %v352
      %v768 = vunpack.c.l.b16 %v353
      %v769 = vunpack.c.h.b16 %v353
      %v770 = vunpack.c.l.b16 %v354
      %v771 = vunpack.c.h.b16 %v354
      %v772 = vunpack.c.l.b16 %v355
      %v773 = vunpack.c.h.b16 %v355
      %v774 = vunpack.c.l.b16 %v356
      %v775 = vunpack.c.h.b16 %v356
      %v776 = vunpack.c.l.b16 %v357
      %v777 = vunpack.c.h.b16 %v357
      %v778 = vpack.c.b16 %v730, %v728
      %v779 = vpack.c.b16 %v731, %v729
      %v780 = vpack.c.b16 %v734, %v732
      %v781 = vpack.c.b16 %v735, %v733
      %v782 = vpack.c.b16 %v738, %v736
      %v783 = vpack.c.b16 %v739, %v737
      %v784 = vpack.c.b16 %v742, %v740
      %v785 = vpack.c.b16 %v743, %v741
      %v786 = vpack.c.b16 %v746, %v744
      %v787 = vpack.c.b16 %v747, %v745
      %v788 = vpack.c.b16 %v750, %v748
      %v789 = vpack.c.b16 %v751, %v749
      %v790 = vpack.c.b16 %v754, %v752
      %v791 = vpack.c.b16 %v755, %v753
      %v792 = vpack.c.b16 %v758, %v756
      %v793 = vpack.c.b16 %v759, %v757
      %v794 = vpack.c.b16 %v762, %v760
      %v795 = vpack.c.b16 %v763, %v761
      %v796 = vpack.c.b16 %v766, %v764
      %v797 = vpack.c.b16 %v767, %v765
      %v798 = vpack.c.b16 %v770, %v768
      %v799 = vpack.c.b16 %v771, %v769
      %v800 = vpack.c.b16 %v774, %v772
      %v801 = vpack.c.b16 %v775, %v773
      %v802 = vpack.c.b16 %v776, %v776
      %v803 = vpack.c.b16 %v777, %v777
      %804 = vrot.lane.b32.xlu0 %v778, 94
      %v805 = vpop.permute.xlu0 %804
      %806 = vrot.lane.b32.xlu0 %v779, 94
      %v807 = vpop.permute.xlu0 %806
      %808 = vrot.lane.b32.xlu0 %v780, 94
      %v809 = vpop.permute.xlu0 %808
      %810 = vrot.lane.b32.xlu0 %v781, 94
      %v811 = vpop.permute.xlu0 %810
      %812 = vrot.lane.b32.xlu0 %v782, 94
      %v813 = vpop.permute.xlu0 %812
      %814 = vrot.lane.b32.xlu0 %v783, 94
      %v815 = vpop.permute.xlu0 %814
      %816 = vrot.lane.b32.xlu0 %v784, 94
      %v817 = vpop.permute.xlu0 %816
      %818 = vrot.lane.b32.xlu0 %v785, 94
      %v819 = vpop.permute.xlu0 %818
      %820 = vrot.lane.b32.xlu0 %v786, 94
      %v821 = vpop.permute.xlu0 %820
      %822 = vrot.lane.b32.xlu0 %v787, 94
      %v823 = vpop.permute.xlu0 %822
      %824 = vrot.lane.b32.xlu0 %v788, 94
      %v825 = vpop.permute.xlu0 %824
      %826 = vrot.lane.b32.xlu0 %v789, 94
      %v827 = vpop.permute.xlu0 %826
      %828 = vrot.lane.b32.xlu0 %v790, 94
      %v829 = vpop.permute.xlu0 %828
      %830 = vrot.lane.b32.xlu0 %v791, 94
      %v831 = vpop.permute.xlu0 %830
      %832 = vrot.lane.b32.xlu0 %v792, 94
      %v833 = vpop.permute.xlu0 %832
      %834 = vrot.lane.b32.xlu0 %v793, 94
      %v835 = vpop.permute.xlu0 %834
      %836 = vrot.lane.b32.xlu0 %v794, 94
      %v837 = vpop.permute.xlu0 %836
      %838 = vrot.lane.b32.xlu0 %v795, 94
      %v839 = vpop.permute.xlu0 %838
      %840 = vrot.lane.b32.xlu0 %v796, 94
      %v841 = vpop.permute.xlu0 %840
      %842 = vrot.lane.b32.xlu0 %v797, 94
      %v843 = vpop.permute.xlu0 %842
      %844 = vrot.lane.b32.xlu0 %v798, 94
      %v845 = vpop.permute.xlu0 %844
      %846 = vrot.lane.b32.xlu0 %v799, 94
      %v847 = vpop.permute.xlu0 %846
      %848 = vrot.lane.b32.xlu0 %v800, 94
      %v849 = vpop.permute.xlu0 %848
      %850 = vrot.lane.b32.xlu0 %v801, 94
      %v851 = vpop.permute.xlu0 %850
      %852 = vrot.lane.b32.xlu0 %v802, 94
      %v853 = vpop.permute.xlu0 %852
      %854 = vrot.lane.b32.xlu0 %v803, 94
      %v855 = vpop.permute.xlu0 %854
      %v856 = vsel %vm469, %v805, %v807
      %v857 = vsel %vm469, %v809, %v811
      %v858 = vsel %vm469, %v813, %v815
      %v859 = vsel %vm469, %v817, %v819
      %v860 = vsel %vm469, %v821, %v823
      %v861 = vsel %vm469, %v825, %v827
      %v862 = vsel %vm469, %v829, %v831
      %v863 = vsel %vm469, %v833, %v835
      %v864 = vsel %vm469, %v837, %v839
      %v865 = vsel %vm469, %v841, %v843
      %v866 = vsel %vm469, %v845, %v847
      %v867 = vsel %vm469, %v849, %v851
      %v868 = vsel %vm469, %v853, %v855
      %v908 = vmul.bf16 %v501, %v805
      %v909 = vmul.bf16 %v505, %v856
      %v910 = vmul.bf16 %v509, %v807
      %v911 = vmul.bf16 %v513, %v809
      %v912 = vmul.bf16 %v517, %v857
      %v913 = vmul.bf16 %v521, %v811
      %v914 = vmul.bf16 %v525, %v813
      %v915 = vmul.bf16 %v529, %v858
      %v916 = vmul.bf16 %v533, %v815
      %v917 = vmul.bf16 %v537, %v817
      %v918 = vmul.bf16 %v541, %v859
      %v919 = vmul.bf16 %v545, %v819
      %v920 = vmul.bf16 %v549, %v821
      %v921 = vmul.bf16 %v553, %v860
      %v922 = vmul.bf16 %v557, %v823
      %v923 = vmul.bf16 %v561, %v825
      %v924 = vmul.bf16 %v565, %v861
      %v925 = vmul.bf16 %v569, %v827
      %v926 = vmul.bf16 %v573, %v829
      %v927 = vmul.bf16 %v577, %v862
      %v928 = vmul.bf16 %v581, %v831
      %v929 = vmul.bf16 %v585, %v833
      %v930 = vmul.bf16 %v589, %v863
      %v931 = vmul.bf16 %v593, %v835
      %v932 = vmul.bf16 %v648, %v837
      %v933 = vmul.bf16 %v678, %v864
      %v934 = vmul.bf16 %v679, %v839
      %v935 = vmul.bf16 %v654, %v841
      %v936 = vmul.bf16 %v680, %v865
      %v937 = vmul.bf16 %v681, %v843
      %v938 = vmul.bf16 %v660, %v845
      %v939 = vmul.bf16 %v682, %v866
      %v940 = vmul.bf16 %v683, %v847
      %v941 = vmul.bf16 %v666, %v849
      %v942 = vmul.bf16 %v684, %v867
      %v943 = vmul.bf16 %v685, %v851
      %v944 = vmul.bf16 %v672, %v853
      %v945 = vmul.bf16 %v686, %v868
      %v946 = vmul.bf16 %v687, %v855
      %v949 = vsel %vm498, %v944, 1065369472
      %v951 = vsel %vm498, %v945, 1065369472
      %v953 = vsel %vm498, %v946, 1065369472
      %v954 = vld [vmem:[%s2] sm:$0xff]
      %v956 = vunpack.c.l.b16 %v954
      %v957 = vunpack.c.h.b16 %v954
      %v958 = vpack.c.b16 %v956, %v956
      %v959 = vpack.c.b16 %v957, %v957
      %1000 = vrot.lane.b32.xlu0 %v908, 34
      %v1001 = vpop.permute.xlu0 %1000
      %1002 = vrot.lane.b32.xlu0 %v909, 34
      %v1003 = vpop.permute.xlu0 %1002
      %1004 = vrot.lane.b32.xlu0 %v910, 34
      %v1005 = vpop.permute.xlu0 %1004
      %1006 = vrot.lane.b32.xlu0 %v911, 34
      %v1007 = vpop.permute.xlu0 %1006
      %1008 = vrot.lane.b32.xlu0 %v912, 34
      %v1009 = vpop.permute.xlu0 %1008
      %1010 = vrot.lane.b32.xlu0 %v913, 34
      %v1011 = vpop.permute.xlu0 %1010
      %1012 = vrot.lane.b32.xlu0 %v914, 34
      %v1013 = vpop.permute.xlu0 %1012
      %1014 = vrot.lane.b32.xlu0 %v915, 34
      %v1015 = vpop.permute.xlu0 %1014
      %1016 = vrot.lane.b32.xlu0 %v916, 34
      %v1017 = vpop.permute.xlu0 %1016
      %1018 = vrot.lane.b32.xlu0 %v917, 34
      %v1019 = vpop.permute.xlu0 %1018
      %1020 = vrot.lane.b32.xlu0 %v918, 34
      %v1021 = vpop.permute.xlu0 %1020
      %1022 = vrot.lane.b32.xlu0 %v919, 34
      %v1023 = vpop.permute.xlu0 %1022
      %1024 = vrot.lane.b32.xlu0 %v920, 34
      %v1025 = vpop.permute.xlu0 %1024
      %1026 = vrot.lane.b32.xlu0 %v921, 34
      %v1027 = vpop.permute.xlu0 %1026
      %1028 = vrot.lane.b32.xlu0 %v922, 34
      %v1029 = vpop.permute.xlu0 %1028
      %1030 = vrot.lane.b32.xlu0 %v923, 34
      %v1031 = vpop.permute.xlu0 %1030
      %1032 = vrot.lane.b32.xlu0 %v924, 34
      %v1033 = vpop.permute.xlu0 %1032
      %1034 = vrot.lane.b32.xlu0 %v925, 34
      %v1035 = vpop.permute.xlu0 %1034
      %1036 = vrot.lane.b32.xlu0 %v926, 34
      %v1037 = vpop.permute.xlu0 %1036
      %1038 = vrot.lane.b32.xlu0 %v927, 34
      %v1039 = vpop.permute.xlu0 %1038
      %1040 = vrot.lane.b32.xlu0 %v928, 34
      %v1041 = vpop.permute.xlu0 %1040
      %1042 = vrot.lane.b32.xlu0 %v929, 34
      %v1043 = vpop.permute.xlu0 %1042
      %1044 = vrot.lane.b32.xlu0 %v930, 34
      %v1045 = vpop.permute.xlu0 %1044
      %1046 = vrot.lane.b32.xlu0 %v931, 34
      %v1047 = vpop.permute.xlu0 %1046
      %1048 = vrot.lane.b32.xlu0 %v932, 34
      %v1049 = vpop.permute.xlu0 %1048
      %1050 = vrot.lane.b32.xlu0 %v933, 34
      %v1051 = vpop.permute.xlu0 %1050
      %1052 = vrot.lane.b32.xlu0 %v934, 34
      %v1053 = vpop.permute.xlu0 %1052
      %1054 = vrot.lane.b32.xlu0 %v935, 34
      %v1055 = vpop.permute.xlu0 %1054
      %1056 = vrot.lane.b32.xlu0 %v936, 34
      %v1057 = vpop.permute.xlu0 %1056
      %1058 = vrot.lane.b32.xlu0 %v937, 34
      %v1059 = vpop.permute.xlu0 %1058
      %1060 = vrot.lane.b32.xlu0 %v938, 34
      %v1061 = vpop.permute.xlu0 %1060
      %1062 = vrot.lane.b32.xlu0 %v939, 34
      %v1063 = vpop.permute.xlu0 %1062
      %1064 = vrot.lane.b32.xlu0 %v940, 34
      %v1065 = vpop.permute.xlu0 %1064
      %1066 = vrot.lane.b32.xlu0 %v941, 34
      %v1067 = vpop.permute.xlu0 %1066
      %1068 = vrot.lane.b32.xlu0 %v942, 34
      %v1069 = vpop.permute.xlu0 %1068
      %1070 = vrot.lane.b32.xlu0 %v943, 34
      %v1071 = vpop.permute.xlu0 %1070
      %1072 = vrot.lane.b32.xlu0 %v949, 34
      %v1073 = vpop.permute.xlu0 %1072
      %1074 = vrot.lane.b32.xlu0 %v951, 34
      %v1075 = vpop.permute.xlu0 %1074
      %1076 = vrot.lane.b32.xlu0 %v953, 34
      %v1077 = vpop.permute.xlu0 %1076
      %vm1078 = vcmask 277504
      %v1079 = vsel %vm1078, %v1001, %v1003
      %v1080 = vsel %vm1078, %v1003, %v1005
      %v1081 = vsel %vm1078, %v1007, %v1009
      %v1082 = vsel %vm1078, %v1009, %v1011
      %v1083 = vsel %vm1078, %v1013, %v1015
      %v1084 = vsel %vm1078, %v1015, %v1017
      %v1085 = vsel %vm1078, %v1019, %v1021
      %v1086 = vsel %vm1078, %v1021, %v1023
      %v1087 = vsel %vm1078, %v1025, %v1027
      %v1088 = vsel %vm1078, %v1027, %v1029
      %v1089 = vsel %vm1078, %v1031, %v1033
      %v1090 = vsel %vm1078, %v1033, %v1035
      %v1091 = vsel %vm1078, %v1037, %v1039
      %v1092 = vsel %vm1078, %v1039, %v1041
      %v1093 = vsel %vm1078, %v1043, %v1045
      %v1094 = vsel %vm1078, %v1045, %v1047
      %v1095 = vsel %vm1078, %v1049, %v1051
      %v1096 = vsel %vm1078, %v1051, %v1053
      %v1097 = vsel %vm1078, %v1055, %v1057
      %v1098 = vsel %vm1078, %v1057, %v1059
      %v1099 = vsel %vm1078, %v1061, %v1063
      %v1100 = vsel %vm1078, %v1063, %v1065
      %v1101 = vsel %vm1078, %v1067, %v1069
      %v1102 = vsel %vm1078, %v1069, %v1071
      %v1103 = vsel %vm1078, %v1073, %v1075
      %v1104 = vsel %vm1078, %v1075, %v1077
      %vm1129 = vcmask 596992
      %v1131 = vsel %vm1129, %v959, 0
      %vm1133 = vcmask 1044480
      %v1134 = vsel %vm498, 4294967295, 65535
      %v1135 = vsel %vm1133, %v1134, 0
      %v1137 = vand.u32 %v1103, %v1135
      %v1140 = vand.u32 %v1104, %v1135
      %1142 = vmatprep.subr.bf16.mxu0 %v1080
      %1143 = vmatpush1.bf16.msra.mxu0 %v1079
      %1144 = vmatprep.subr.bf16.mxu0 %v1082
      %1145 = vmatpush1.bf16.msra.mxu0 %v1081
      %1146 = vmatprep.subr.bf16.mxu0 %v1084
      %1147 = vmatpush1.bf16.msra.mxu0 %v1083
      %1148 = vmatprep.subr.bf16.mxu0 %v1086
      %1149 = vmatpush1.bf16.msra.mxu0 %v1085
      %1150 = vmatprep.subr.bf16.mxu0 %v1088
      %1151 = vmatpush1.bf16.msra.mxu0 %v1087
      %1152 = vmatprep.subr.bf16.mxu0 %v1090
      %1153 = vmatpush1.bf16.msra.mxu0 %v1089
      %1154 = vmatprep.subr.bf16.mxu0 %v1092
      %1155 = vmatpush1.bf16.msra.mxu0 %v1091
      %1156 = vmatprep.subr.bf16.mxu0 %v1094
      %1157 = vmatpush1.bf16.msra.mxu0 %v1093
      %1158 = vmatprep.subr.bf16.mxu0 %v1096
      %1159 = vmatpush1.bf16.msra.mxu0 %v1095
      %1160 = vmatprep.subr.bf16.mxu0 %v1098
      %1161 = vmatpush1.bf16.msra.mxu0 %v1097
      %1162 = vmatprep.subr.bf16.mxu0 %v1100
      %1163 = vmatpush1.bf16.msra.mxu0 %v1099
      %1164 = vmatprep.subr.bf16.mxu0 %v1102
      %1165 = vmatpush1.bf16.msra.mxu0 %v1101
      %1166 = vmatprep.subr.bf16.mxu0 %v1140
      %1167 = vmatpush1.bf16.msra.mxu0 %v1137
      %1168 = vmatprep.subr.bf16.mxu0 0
      %1169 = vmatpush1.bf16.msra.mxu0 0
      %1170 = vmatprep.subr.bf16.mxu0 0
      %1171 = vmatpush1.bf16.msra.mxu0 0
      %1172 = vmatprep.subr.bf16.mxu0 0
      %1173 = vmatpush1.bf16.msra.mxu0 0
      %1174 = vmatprep.mubr.bf16.mxu0 %v1131
      %1175 = vmatmul.mubr.bf16.gmra.mrb[0].mxu0 %v958
      %v1176 = vpop.f32.mrb[0].mxu0
      %v1177 = vadd.f32 0.0, %v1176
      %v1178 = vpop.f32.mrb[0].mxu0
      %v1179 = vadd.f32 0.0, %v1178
      %v1180 = vpop.f32.mrb[0].mxu0
      %v1181 = vpop.f32.mrb[0].mxu0
      %1182 = vdwg.mxu0
      %v1183 = vmax.f32 %v1177, 0.0
      %v1184 = vmax.f32 %v1179, 0.0
      %v1185 = vpack.c.bf16 %v1183, %v1183
      %v1186 = vpack.c.bf16 %v1184, %v1184
      %v1189 = vrot.slane %v1185, 4
      %v1190 = vrot.slane %v1186, 4
      %1191 = vrot.lane.b32.xlu0 %v1189, 127
      %v1192 = vpop.permute.xlu0 %1191
      %1193 = vrot.lane.b32.xlu0 %v1190, 127
      %v1194 = vpop.permute.xlu0 %1193
      %v1195 = vsel %vm372, %v367, %v1192
      %v1196 = vsel %vm372, %v1192, %v1194
      %1197 = vrot.lane.b32.xlu0 %v1185, 126
      %v1198 = vpop.permute.xlu0 %1197
      %1199 = vrot.lane.b32.xlu0 %v1186, 126
      %v1200 = vpop.permute.xlu0 %1199
      %v1201 = vsel %vm381, %v376, %v1198
      %v1202 = vsel %vm381, %v1198, %v1200
      %1203 = vrot.lane.b32.xlu0 %v1189, 125
      %v1204 = vpop.permute.xlu0 %1203
      %1205 = vrot.lane.b32.xlu0 %v1190, 125
      %v1206 = vpop.permute.xlu0 %1205
      %v1207 = vsel %vm390, %v385, %v1204
      %v1208 = vsel %vm390, %v1204, %v1206
      %1209 = vrot.lane.b32.xlu0 %v1185, 124
      %v1210 = vpop.permute.xlu0 %1209
      %1211 = vrot.lane.b32.xlu0 %v1186, 124
      %v1212 = vpop.permute.xlu0 %1211
      %v1213 = vsel %vm399, %v394, %v1210
      %v1214 = vsel %vm399, %v1210, %v1212
      %1215 = vrot.lane.b32.xlu0 %v1189, 112
      %v1216 = vpop.permute.xlu0 %1215
      %1217 = vrot.lane.b32.xlu0 %v1190, 112
      %v1218 = vpop.permute.xlu0 %1217
      %v1219 = vsel %vm408, %v403, %v1216
      %v1220 = vsel %vm408, %v1216, %v1218
      %1221 = vrot.lane.b32.xlu0 %v1185, 111
      %v1222 = vpop.permute.xlu0 %1221
      %1223 = vrot.lane.b32.xlu0 %v1186, 111
      %v1224 = vpop.permute.xlu0 %1223
      %v1225 = vsel %vm417, %v412, %v1222
      %v1226 = vsel %vm417, %v1222, %v1224
      %1227 = vrot.lane.b32.xlu0 %v1189, 110
      %v1228 = vpop.permute.xlu0 %1227
      %1229 = vrot.lane.b32.xlu0 %v1190, 110
      %v1230 = vpop.permute.xlu0 %1229
      %v1231 = vsel %vm426, %v421, %v1228
      %v1232 = vsel %vm426, %v1228, %v1230
      %1233 = vrot.lane.b32.xlu0 %v1185, 109
      %v1234 = vpop.permute.xlu0 %1233
      %1235 = vrot.lane.b32.xlu0 %v1186, 109
      %v1236 = vpop.permute.xlu0 %1235
      %v1237 = vsel %vm435, %v430, %v1234
      %v1238 = vsel %vm435, %v1234, %v1236
      %1239 = vrot.lane.b32.xlu0 %v1189, 108
      %v1240 = vpop.permute.xlu0 %1239
      %1241 = vrot.lane.b32.xlu0 %v1190, 108
      %v1242 = vpop.permute.xlu0 %1241
      %v1243 = vsel %vm444, %v439, %v1240
      %v1244 = vsel %vm444, %v1240, %v1242
      %1245 = vrot.lane.b32.xlu0 %v1185, 96
      %v1246 = vpop.permute.xlu0 %1245
      %1247 = vrot.lane.b32.xlu0 %v1186, 96
      %v1248 = vpop.permute.xlu0 %1247
      %v1249 = vsel %vm453, %v448, %v1246
      %v1250 = vsel %vm453, %v1246, %v1248
      %1251 = vrot.lane.b32.xlu0 %v1189, 95
      %v1252 = vpop.permute.xlu0 %1251
      %1253 = vrot.lane.b32.xlu0 %v1190, 95
      %v1254 = vpop.permute.xlu0 %1253
      %v1255 = vsel %vm462, %v457, %v1252
      %v1256 = vsel %vm462, %v1252, %v1254
      %1257 = vrot.lane.b32.xlu0 %v1185, 94
      %v1258 = vpop.permute.xlu0 %1257
      %1259 = vrot.lane.b32.xlu0 %v1186, 94
      %v1260 = vpop.permute.xlu0 %1259
      %v1261 = vsel %vm469, %v1258, %v1260
      %1262 = vrot.lane.b32.xlu0 %v1189, 93
      %v1263 = vpop.permute.xlu0 %1262
      %1264 = vrot.lane.b32.xlu0 %v1190, 93
      %v1265 = vpop.permute.xlu0 %1264
      %v1266 = vsel %vm477, %v1263, %v1265
      %v1267 = vsel %vm477, %v1265, %v476
      %1268 = vrot.lane.b32.xlu0 %v1185, 92
      %v1269 = vpop.permute.xlu0 %1268
      %1270 = vrot.lane.b32.xlu0 %v1186, 92
      %v1271 = vpop.permute.xlu0 %1270
      %v1272 = vsel %vm486, %v1269, %v1271
      %v1273 = vsel %vm486, %v1271, %v485
      %1274 = vrot.lane.b32.xlu0 %v1189, 80
      %v1275 = vpop.permute.xlu0 %1274
      %1276 = vrot.lane.b32.xlu0 %v1190, 80
      %v1277 = vpop.permute.xlu0 %1276
      %v1278 = vsel %vm495, %v1275, %v1277
      %v1279 = vsel %vm495, %v1277, %v494
      %v1281 = vsel %vm498, 0, %v1195
      %v1285 = vsel %vm498, %v1185, %v1196
      %v1289 = vsel %vm498, %v1186, %v1194
      %v1293 = vsel %vm498, %v1201, %v1207
      %v1297 = vsel %vm498, %v1202, %v1208
      %v1301 = vsel %vm498, %v1200, %v1206
      %v1305 = vsel %vm498, %v1213, %v1219
      %v1309 = vsel %vm498, %v1214, %v1220
      %v1313 = vsel %vm498, %v1212, %v1218
      %v1317 = vsel %vm498, %v1225, %v1231
      %v1321 = vsel %vm498, %v1226, %v1232
      %v1325 = vsel %vm498, %v1224, %v1230
      %v1329 = vsel %vm498, %v1237, %v1243
      %v1333 = vsel %vm498, %v1238, %v1244
      %v1337 = vsel %vm498, %v1236, %v1242
      %v1341 = vsel %vm498, %v1249, %v1255
      %v1345 = vsel %vm498, %v1250, %v1256
      %v1349 = vsel %vm498, %v1248, %v1254
      %v1353 = vsel %vm498, %v1258, %v1263
      %v1357 = vsel %vm498, %v1261, %v1266
      %v1361 = vsel %vm498, %v1260, %v1267
      %v1365 = vsel %vm498, %v1269, %v1275
      %v1369 = vsel %vm498, %v1272, %v1278
      %v1373 = vsel %vm498, %v1273, %v1279
      %v1375 = vsel %vm372, %v1194, %v367
      %v1376 = vsel %vm381, %v1200, %v376
      %v1377 = vsel %vm390, %v1206, %v385
      %1378 = vrot.lane.b32.xlu0 %v1185, 113
      %v1379 = vpop.permute.xlu0 %1378
      %1380 = vrot.lane.b32.xlu0 %v1186, 113
      %v1381 = vpop.permute.xlu0 %1380
      %v1382 = vsel %vm604, %v1379, %v1381
      %v1383 = vsel %vm604, %v1381, %v603
      %v1384 = vsel %vm408, %v1218, %v403
      %v1385 = vsel %vm417, %v1224, %v412
      %v1386 = vsel %vm426, %v1230, %v421
      %v1387 = vsel %vm435, %v1236, %v430
      %v1389 = vsel %vm498, %v1186, %v1375
      %v1392 = vsel %vm498, %v1376, %v1377
      %v1394 = vsel %vm498, %v1382, %v1220
      %v1397 = vsel %vm498, %v1383, %v1384
      %v1400 = vsel %vm498, %v1385, %v1386
      %1409 = vrot.lane.b32.xlu0 %v1285, 79
      %v1410 = vpop.permute.xlu0 %1409
      %1411 = vrot.lane.b32.xlu0 %v1389, 79
      %v1412 = vpop.permute.xlu0 %1411
      %1413 = vrot.lane.b32.xlu0 %v1297, 79
      %v1414 = vpop.permute.xlu0 %1413
      %1415 = vrot.lane.b32.xlu0 %v1392, 79
      %v1416 = vpop.permute.xlu0 %1415
      %1417 = vrot.lane.b32.xlu0 %v1394, 79
      %v1418 = vpop.permute.xlu0 %1417
      %1419 = vrot.lane.b32.xlu0 %v1397, 79
      %v1420 = vpop.permute.xlu0 %1419
      %1421 = vrot.lane.b32.xlu0 %v1321, 79
      %v1422 = vpop.permute.xlu0 %1421
      %1423 = vrot.lane.b32.xlu0 %v1400, 79
      %v1424 = vpop.permute.xlu0 %1423
      %1425 = vrot.lane.b32.xlu0 %v1238, 79
      %v1426 = vpop.permute.xlu0 %1425
      %1427 = vrot.lane.b32.xlu0 %v1387, 79
      %v1428 = vpop.permute.xlu0 %1427
      %v1429 = vsel %vm677, %v1410, %v1412
      %v1430 = vsel %vm677, %v1412, %v652
      %v1431 = vsel %vm677, %v1414, %v1416
      %v1432 = vsel %vm677, %v1416, %v658
      %v1433 = vsel %vm677, %v1418, %v1420
      %v1434 = vsel %vm677, %v1420, %v664
      %v1435 = vsel %vm677, %v1422, %v1424
      %v1436 = vsel %vm677, %v1424, %v670
      %v1437 = vsel %vm677, %v1426, %v1428
      %v1438 = vsel %vm677, %v1428, %v676
      %v1454 = vmul.bf16 %v1281, %v805
      %v1455 = vmul.bf16 %v1285, %v856
      %v1456 = vmul.bf16 %v1289, %v807
      %v1457 = vmul.bf16 %v1293, %v809
      %v1458 = vmul.bf16 %v1297, %v857
      %v1459 = vmul.bf16 %v1301, %v811
      %v1460 = vmul.bf16 %v1305, %v813
      %v1461 = vmul.bf16 %v1309, %v858
      %v1462 = vmul.bf16 %v1313, %v815
      %v1463 = vmul.bf16 %v1317, %v817
      %v1464 = vmul.bf16 %v1321, %v859
      %v1465 = vmul.bf16 %v1325, %v819
      %v1466 = vmul.bf16 %v1329, %v821
      %v1467 = vmul.bf16 %v1333, %v860
      %v1468 = vmul.bf16 %v1337, %v823
      %v1469 = vmul.bf16 %v1341, %v825
      %v1470 = vmul.bf16 %v1345, %v861
      %v1471 = vmul.bf16 %v1349, %v827
      %v1472 = vmul.bf16 %v1353, %v829
      %v1473 = vmul.bf16 %v1357, %v862
      %v1474 = vmul.bf16 %v1361, %v831
      %v1475 = vmul.bf16 %v1365, %v833
      %v1476 = vmul.bf16 %v1369, %v863
      %v1477 = vmul.bf16 %v1373, %v835
      %v1478 = vmul.bf16 %v1410, %v837
      %v1479 = vmul.bf16 %v1429, %v864
      %v1480 = vmul.bf16 %v1430, %v839
      %v1481 = vmul.bf16 %v1414, %v841
      %v1482 = vmul.bf16 %v1431, %v865
      %v1483 = vmul.bf16 %v1432, %v843
      %v1484 = vmul.bf16 %v1418, %v845
      %v1485 = vmul.bf16 %v1433, %v866
      %v1486 = vmul.bf16 %v1434, %v847
      %v1487 = vmul.bf16 %v1422, %v849
      %v1488 = vmul.bf16 %v1435, %v867
      %v1489 = vmul.bf16 %v1436, %v851
      %v1490 = vmul.bf16 %v1426, %v853
      %v1491 = vmul.bf16 %v1437, %v868
      %v1492 = vmul.bf16 %v1438, %v855
      %v1494 = vsel %vm498, %v1490, 1065369472
      %v1496 = vsel %vm498, %v1491, 1065369472
      %v1498 = vsel %vm498, %v1492, 1065369472
      %v1499 = vld [vmem:[%s3] sm:$0xff]
      %v1501 = vunpack.c.l.b16 %v1499
      %v1502 = vunpack.c.h.b16 %v1499
      %v1503 = vpack.c.b16 %v1501, %v1501
      %v1504 = vpack.c.b16 %v1502, %v1502
      %1545 = vrot.lane.b32.xlu0 %v1454, 34
      %v1546 = vpop.permute.xlu0 %1545
      %1547 = vrot.lane.b32.xlu0 %v1455, 34
      %v1548 = vpop.permute.xlu0 %1547
      %1549 = vrot.lane.b32.xlu0 %v1456, 34
      %v1550 = vpop.permute.xlu0 %1549
      %1551 = vrot.lane.b32.xlu0 %v1457, 34
      %v1552 = vpop.permute.xlu0 %1551
      %1553 = vrot.lane.b32.xlu0 %v1458, 34
      %v1554 = vpop.permute.xlu0 %1553
      %1555 = vrot.lane.b32.xlu0 %v1459, 34
      %v1556 = vpop.permute.xlu0 %1555
      %1557 = vrot.lane.b32.xlu0 %v1460, 34
      %v1558 = vpop.permute.xlu0 %1557
      %1559 = vrot.lane.b32.xlu0 %v1461, 34
      %v1560 = vpop.permute.xlu0 %1559
      %1561 = vrot.lane.b32.xlu0 %v1462, 34
      %v1562 = vpop.permute.xlu0 %1561
      %1563 = vrot.lane.b32.xlu0 %v1463, 34
      %v1564 = vpop.permute.xlu0 %1563
      %1565 = vrot.lane.b32.xlu0 %v1464, 34
      %v1566 = vpop.permute.xlu0 %1565
      %1567 = vrot.lane.b32.xlu0 %v1465, 34
      %v1568 = vpop.permute.xlu0 %1567
      %1569 = vrot.lane.b32.xlu0 %v1466, 34
      %v1570 = vpop.permute.xlu0 %1569
      %1571 = vrot.lane.b32.xlu0 %v1467, 34
      %v1572 = vpop.permute.xlu0 %1571
      %1573 = vrot.lane.b32.xlu0 %v1468, 34
      %v1574 = vpop.permute.xlu0 %1573
      %1575 = vrot.lane.b32.xlu0 %v1469, 34
      %v1576 = vpop.permute.xlu0 %1575
      %1577 = vrot.lane.b32.xlu0 %v1470, 34
      %v1578 = vpop.permute.xlu0 %1577
      %1579 = vrot.lane.b32.xlu0 %v1471, 34
      %v1580 = vpop.permute.xlu0 %1579
      %1581 = vrot.lane.b32.xlu0 %v1472, 34
      %v1582 = vpop.permute.xlu0 %1581
      %1583 = vrot.lane.b32.xlu0 %v1473, 34
      %v1584 = vpop.permute.xlu0 %1583
      %1585 = vrot.lane.b32.xlu0 %v1474, 34
      %v1586 = vpop.permute.xlu0 %1585
      %1587 = vrot.lane.b32.xlu0 %v1475, 34
      %v1588 = vpop.permute.xlu0 %1587
      %1589 = vrot.lane.b32.xlu0 %v1476, 34
      %v1590 = vpop.permute.xlu0 %1589
      %1591 = vrot.lane.b32.xlu0 %v1477, 34
      %v1592 = vpop.permute.xlu0 %1591
      %1593 = vrot.lane.b32.xlu0 %v1478, 34
      %v1594 = vpop.permute.xlu0 %1593
      %1595 = vrot.lane.b32.xlu0 %v1479, 34
      %v1596 = vpop.permute.xlu0 %1595
      %1597 = vrot.lane.b32.xlu0 %v1480, 34
      %v1598 = vpop.permute.xlu0 %1597
      %1599 = vrot.lane.b32.xlu0 %v1481, 34
      %v1600 = vpop.permute.xlu0 %1599
      %1601 = vrot.lane.b32.xlu0 %v1482, 34
      %v1602 = vpop.permute.xlu0 %1601
      %1603 = vrot.lane.b32.xlu0 %v1483, 34
      %v1604 = vpop.permute.xlu0 %1603
      %1605 = vrot.lane.b32.xlu0 %v1484, 34
      %v1606 = vpop.permute.xlu0 %1605
      %1607 = vrot.lane.b32.xlu0 %v1485, 34
      %v1608 = vpop.permute.xlu0 %1607
      %1609 = vrot.lane.b32.xlu0 %v1486, 34
      %v1610 = vpop.permute.xlu0 %1609
      %1611 = vrot.lane.b32.xlu0 %v1487, 34
      %v1612 = vpop.permute.xlu0 %1611
      %1613 = vrot.lane.b32.xlu0 %v1488, 34
      %v1614 = vpop.permute.xlu0 %1613
      %1615 = vrot.lane.b32.xlu0 %v1489, 34
      %v1616 = vpop.permute.xlu0 %1615
      %1617 = vrot.lane.b32.xlu0 %v1494, 34
      %v1618 = vpop.permute.xlu0 %1617
      %1619 = vrot.lane.b32.xlu0 %v1496, 34
      %v1620 = vpop.permute.xlu0 %1619
      %1621 = vrot.lane.b32.xlu0 %v1498, 34
      %v1622 = vpop.permute.xlu0 %1621
      %v1623 = vsel %vm1078, %v1546, %v1548
      %v1624 = vsel %vm1078, %v1548, %v1550
      %v1625 = vsel %vm1078, %v1552, %v1554
      %v1626 = vsel %vm1078, %v1554, %v1556
      %v1627 = vsel %vm1078, %v1558, %v1560
      %v1628 = vsel %vm1078, %v1560, %v1562
      %v1629 = vsel %vm1078, %v1564, %v1566
      %v1630 = vsel %vm1078, %v1566, %v1568
      %v1631 = vsel %vm1078, %v1570, %v1572
      %v1632 = vsel %vm1078, %v1572, %v1574
      %v1633 = vsel %vm1078, %v1576, %v1578
      %v1634 = vsel %vm1078, %v1578, %v1580
      %v1635 = vsel %vm1078, %v1582, %v1584
      %v1636 = vsel %vm1078, %v1584, %v1586
      %v1637 = vsel %vm1078, %v1588, %v1590
      %v1638 = vsel %vm1078, %v1590, %v1592
      %v1639 = vsel %vm1078, %v1594, %v1596
      %v1640 = vsel %vm1078, %v1596, %v1598
      %v1641 = vsel %vm1078, %v1600, %v1602
      %v1642 = vsel %vm1078, %v1602, %v1604
      %v1643 = vsel %vm1078, %v1606, %v1608
      %v1644 = vsel %vm1078, %v1608, %v1610
      %v1645 = vsel %vm1078, %v1612, %v1614
      %v1646 = vsel %vm1078, %v1614, %v1616
      %v1647 = vsel %vm1078, %v1618, %v1620
      %v1648 = vsel %vm1078, %v1620, %v1622
      %v1674 = vsel %vm1129, %v1504, 0
      %v1677 = vand.u32 %v1647, %v1135
      %v1680 = vand.u32 %v1648, %v1135
      %1682 = vmatprep.subr.bf16.mxu0 %v1624
      %1683 = vmatpush1.bf16.msra.mxu0 %v1623
      %1684 = vmatprep.subr.bf16.mxu0 %v1626
      %1685 = vmatpush1.bf16.msra.mxu0 %v1625
      %1686 = vmatprep.subr.bf16.mxu0 %v1628
      %1687 = vmatpush1.bf16.msra.mxu0 %v1627
      %1688 = vmatprep.subr.bf16.mxu0 %v1630
      %1689 = vmatpush1.bf16.msra.mxu0 %v1629
      %1690 = vmatprep.subr.bf16.mxu0 %v1632
      %1691 = vmatpush1.bf16.msra.mxu0 %v1631
      %1692 = vmatprep.subr.bf16.mxu0 %v1634
      %1693 = vmatpush1.bf16.msra.mxu0 %v1633
      %1694 = vmatprep.subr.bf16.mxu0 %v1636
      %1695 = vmatpush1.bf16.msra.mxu0 %v1635
      %1696 = vmatprep.subr.bf16.mxu0 %v1638
      %1697 = vmatpush1.bf16.msra.mxu0 %v1637
      %1698 = vmatprep.subr.bf16.mxu0 %v1640
      %1699 = vmatpush1.bf16.msra.mxu0 %v1639
      %1700 = vmatprep.subr.bf16.mxu0 %v1642
      %1701 = vmatpush1.bf16.msra.mxu0 %v1641
      %1702 = vmatprep.subr.bf16.mxu0 %v1644
      %1703 = vmatpush1.bf16.msra.mxu0 %v1643
      %1704 = vmatprep.subr.bf16.mxu0 %v1646
      %1705 = vmatpush1.bf16.msra.mxu0 %v1645
      %1706 = vmatprep.subr.bf16.mxu0 %v1680
      %1707 = vmatpush1.bf16.msra.mxu0 %v1677
      %1708 = vmatprep.subr.bf16.mxu0 0
      %1709 = vmatpush1.bf16.msra.mxu0 0
      %1710 = vmatprep.subr.bf16.mxu0 0
      %1711 = vmatpush1.bf16.msra.mxu0 0
      %1712 = vmatprep.subr.bf16.mxu0 0
      %1713 = vmatpush1.bf16.msra.mxu0 0
      %1714 = vmatprep.mubr.bf16.mxu0 %v1674
      %1715 = vmatmul.mubr.bf16.gmra.mrb[0].mxu0 %v1503
      %v1716 = vpop.f32.mrb[0].mxu0
      %v1717 = vadd.f32 0.0, %v1716
      %v1718 = vpop.f32.mrb[0].mxu0
      %v1719 = vadd.f32 0.0, %v1718
      %v1720 = vpop.f32.mrb[0].mxu0
      %v1721 = vpop.f32.mrb[0].mxu0
      %1722 = vdwg.mxu0
      %v1723 = vpack.c.bf16 %v274, %v274
      %v1724 = vpack.c.bf16 %v275, %v275
      %v1725 = vpack.c.bf16 %v1717, %v1717
      %v1726 = vpack.c.bf16 %v1719, %v1719
      %v1727 = vld [vmem:[%s4] sm:$0xff]
      %v1728 = vld [vmem:[%s4 + $0x8] sm:$0xff]
      %v1729 = vld [vmem:[%s4 + $0x10] sm:$0xff]
      %v1730 = vld [vmem:[%s4 + $0x18] sm:$0xff]
      %v1731 = vld [vmem:[%s4 + $0x20] sm:$0xff]
      %v1732 = vld [vmem:[%s4 + $0x28] sm:$0xff]
      %v1733 = vld [vmem:[%s4 + $0x30] sm:$0xff]
      %v1734 = vld [vmem:[%s4 + $0x38] sm:$0xff]
      %v1735 = vld [vmem:[%s4 + $0x40] sm:$0xff]
      %v1736 = vld [vmem:[%s4 + $0x48] sm:$0xff]
      %v1737 = vld [vmem:[%s4 + $0x50] sm:$0xff]
      %v1738 = vld [vmem:[%s4 + $0x58] sm:$0xff]
      %v1739 = vld [vmem:[%s4 + $0x60] sm:$0xff]
      %v1740 = vld [vmem:[%s4 + $0x68] sm:$0xff]
      %v1741 = vld [vmem:[%s4 + $0x70] sm:$0xff]
      %v1742 = vld [vmem:[%s4 + $0x78] sm:$0xff]
      %v1743 = vld [vmem:[%s4 + $0x80] sm:$0xff]
      %v1744 = vld [vmem:[%s4 + $0x88] sm:$0xff]
      %v1745 = vld [vmem:[%s4 + $0x90] sm:$0xff]
      %v1746 = vld [vmem:[%s4 + $0x98] sm:$0xff]
      %v1747 = vld [vmem:[%s4 + $0xa0] sm:$0xff]
      %v1748 = vld [vmem:[%s4 + $0xa8] sm:$0xff]
      %v1749 = vld [vmem:[%s4 + $0xb0] sm:$0xff]
      %v1750 = vld [vmem:[%s4 + $0xb8] sm:$0xff]
      %v1751 = vld [vmem:[%s4 + $0xc0] sm:$0xff]
      %v1752 = vld [vmem:[%s4 + $0xc8] sm:$0xff]
      %v1753 = vld [vmem:[%s4 + $0xd0] sm:$0xff]
      %v1754 = vld [vmem:[%s4 + $0xd8] sm:$0xff]
      %v1755 = vld [vmem:[%s4 + $0xe0] sm:$0xff]
      %v1756 = vld [vmem:[%s4 + $0xe8] sm:$0xff]
      %v1757 = vld [vmem:[%s4 + $0xf0] sm:$0xff]
      %v1758 = vld [vmem:[%s4 + $0xf8] sm:$0xff]
      %v1759 = vld [vmem:[%s4 + $0x100] sm:$0xff]
      %v1760 = vld [vmem:[%s4 + $0x108] sm:$0xff]
      %v1761 = vld [vmem:[%s4 + $0x110] sm:$0xff]
      %v1762 = vld [vmem:[%s4 + $0x118] sm:$0xff]
      %v1763 = vld [vmem:[%s4 + $0x120] sm:$0xff]
      %v1764 = vld [vmem:[%s4 + $0x128] sm:$0xff]
      %v1765 = vld [vmem:[%s4 + $0x130] sm:$0xff]
      %v1766 = vld [vmem:[%s4 + $0x138] sm:$0xff]
      %v1767 = vld [vmem:[%s4 + $0x140] sm:$0xff]
      %v1768 = vld [vmem:[%s4 + $0x148] sm:$0xff]
      %v1769 = vld [vmem:[%s4 + $0x150] sm:$0xff]
      %v1770 = vld [vmem:[%s4 + $0x158] sm:$0xff]
      %v1771 = vld [vmem:[%s4 + $0x160] sm:$0xff]
      %v1772 = vld [vmem:[%s4 + $0x168] sm:$0xff]
      %v1773 = vld [vmem:[%s4 + $0x170] sm:$0xff]
      %v1774 = vld [vmem:[%s4 + $0x178] sm:$0xff]
      %v1775 = vld [vmem:[%s4 + $0x180] sm:$0xff]
      %v1776 = vld [vmem:[%s4 + $0x188] sm:$0xff]
      %v1777 = vld [vmem:[%s4 + $0x190] sm:$0xff]
      %v1778 = vld [vmem:[%s4 + $0x198] sm:$0xff]
      %v1779 = vld [vmem:[%s4 + $0x1a0] sm:$0xff]
      %v1780 = vld [vmem:[%s4 + $0x1a8] sm:$0xff]
      %v1781 = vld [vmem:[%s4 + $0x1b0] sm:$0xff]
      %v1782 = vld [vmem:[%s4 + $0x1b8] sm:$0xff]
      %v1783 = vld [vmem:[%s4 + $0x1c0] sm:$0xff]
      %v1784 = vld [vmem:[%s4 + $0x1c8] sm:$0xff]
      %v1785 = vld [vmem:[%s4 + $0x1d0] sm:$0xff]
      %v1786 = vld [vmem:[%s4 + $0x1d8] sm:$0xff]
      %v1787 = vld [vmem:[%s4 + $0x1e0] sm:$0xff]
      %v1788 = vld [vmem:[%s4 + $0x1e8] sm:$0xff]
      %v1789 = vld [vmem:[%s4 + $0x1f0] sm:$0xff]
      %v1790 = vld [vmem:[%s4 + $0x1f8] sm:$0xff]
      %v1855 = vunpack.c.l.b16 %v1727
      %v1856 = vunpack.c.h.b16 %v1727
      %v1857 = vunpack.c.l.b16 %v1728
      %v1858 = vunpack.c.h.b16 %v1728
      %v1859 = vunpack.c.l.b16 %v1729
      %v1860 = vunpack.c.h.b16 %v1729
      %v1861 = vunpack.c.l.b16 %v1730
      %v1862 = vunpack.c.h.b16 %v1730
      %v1863 = vunpack.c.l.b16 %v1731
      %v1864 = vunpack.c.h.b16 %v1731
      %v1865 = vunpack.c.l.b16 %v1732
      %v1866 = vunpack.c.h.b16 %v1732
      %v1867 = vunpack.c.l.b16 %v1733
      %v1868 = vunpack.c.h.b16 %v1733
      %v1869 = vunpack.c.l.b16 %v1734
      %v1870 = vunpack.c.h.b16 %v1734
      %v1871 = vunpack.c.l.b16 %v1735
      %v1872 = vunpack.c.h.b16 %v1735
      %v1873 = vunpack.c.l.b16 %v1736
      %v1874 = vunpack.c.h.b16 %v1736
      %v1875 = vunpack.c.l.b16 %v1737
      %v1876 = vunpack.c.h.b16 %v1737
      %v1877 = vunpack.c.l.b16 %v1738
      %v1878 = vunpack.c.h.b16 %v1738
      %v1879 = vunpack.c.l.b16 %v1739
      %v1880 = vunpack.c.h.b16 %v1739
      %v1881 = vunpack.c.l.b16 %v1740
      %v1882 = vunpack.c.h.b16 %v1740
      %v1883 = vunpack.c.l.b16 %v1741
      %v1884 = vunpack.c.h.b16 %v1741
      %v1885 = vunpack.c.l.b16 %v1742
      %v1886 = vunpack.c.h.b16 %v1742
      %v1887 = vunpack.c.l.b16 %v1743
      %v1888 = vunpack.c.h.b16 %v1743
      %v1889 = vunpack.c.l.b16 %v1744
      %v1890 = vunpack.c.h.b16 %v1744
      %v1891 = vunpack.c.l.b16 %v1745
      %v1892 = vunpack.c.h.b16 %v1745
      %v1893 = vunpack.c.l.b16 %v1746
      %v1894 = vunpack.c.h.b16 %v1746
      %v1895 = vunpack.c.l.b16 %v1747
      %v1896 = vunpack.c.h.b16 %v1747
      %v1897 = vunpack.c.l.b16 %v1748
      %v1898 = vunpack.c.h.b16 %v1748
      %v1899 = vunpack.c.l.b16 %v1749
      %v1900 = vunpack.c.h.b16 %v1749
      %v1901 = vunpack.c.l.b16 %v1750
      %v1902 = vunpack.c.h.b16 %v1750
      %v1903 = vunpack.c.l.b16 %v1751
      %v1904 = vunpack.c.h.b16 %v1751
      %v1905 = vunpack.c.l.b16 %v1752
      %v1906 = vunpack.c.h.b16 %v1752
      %v1907 = vunpack.c.l.b16 %v1753
      %v1908 = vunpack.c.h.b16 %v1753
      %v1909 = vunpack.c.l.b16 %v1754
      %v1910 = vunpack.c.h.b16 %v1754
      %v1911 = vunpack.c.l.b16 %v1755
      %v1912 = vunpack.c.h.b16 %v1755
      %v1913 = vunpack.c.l.b16 %v1756
      %v1914 = vunpack.c.h.b16 %v1756
      %v1915 = vunpack.c.l.b16 %v1757
      %v1916 = vunpack.c.h.b16 %v1757
      %v1917 = vunpack.c.l.b16 %v1758
      %v1918 = vunpack.c.h.b16 %v1758
      %v1919 = vunpack.c.l.b16 %v1759
      %v1920 = vunpack.c.h.b16 %v1759
      %v1921 = vunpack.c.l.b16 %v1760
      %v1922 = vunpack.c.h.b16 %v1760
      %v1923 = vunpack.c.l.b16 %v1761
      %v1924 = vunpack.c.h.b16 %v1761
      %v1925 = vunpack.c.l.b16 %v1762
      %v1926 = vunpack.c.h.b16 %v1762
      %v1927 = vunpack.c.l.b16 %v1763
      %v1928 = vunpack.c.h.b16 %v1763
      %v1929 = vunpack.c.l.b16 %v1764
      %v1930 = vunpack.c.h.b16 %v1764
      %v1931 = vunpack.c.l.b16 %v1765
      %v1932 = vunpack.c.h.b16 %v1765
      %v1933 = vunpack.c.l.b16 %v1766
      %v1934 = vunpack.c.h.b16 %v1766
      %v1935 = vunpack.c.l.b16 %v1767
      %v1936 = vunpack.c.h.b16 %v1767
      %v1937 = vunpack.c.l.b16 %v1768
      %v1938 = vunpack.c.h.b16 %v1768
      %v1939 = vunpack.c.l.b16 %v1769
      %v1940 = vunpack.c.h.b16 %v1769
      %v1941 = vunpack.c.l.b16 %v1770
      %v1942 = vunpack.c.h.b16 %v1770
      %v1943 = vunpack.c.l.b16 %v1771
      %v1944 = vunpack.c.h.b16 %v1771
      %v1945 = vunpack.c.l.b16 %v1772
      %v1946 = vunpack.c.h.b16 %v1772
      %v1947 = vunpack.c.l.b16 %v1773
      %v1948 = vunpack.c.h.b16 %v1773
      %v1949 = vunpack.c.l.b16 %v1774
      %v1950 = vunpack.c.h.b16 %v1774
      %v1951 = vunpack.c.l.b16 %v1775
      %v1952 = vunpack.c.h.b16 %v1775
      %v1953 = vunpack.c.l.b16 %v1776
      %v1954 = vunpack.c.h.b16 %v1776
      %v1955 = vunpack.c.l.b16 %v1777
      %v1956 = vunpack.c.h.b16 %v1777
      %v1957 = vunpack.c.l.b16 %v1778
      %v1958 = vunpack.c.h.b16 %v1778
      %v1959 = vunpack.c.l.b16 %v1779
      %v1960 = vunpack.c.h.b16 %v1779
      %v1961 = vunpack.c.l.b16 %v1780
      %v1962 = vunpack.c.h.b16 %v1780
      %v1963 = vunpack.c.l.b16 %v1781
      %v1964 = vunpack.c.h.b16 %v1781
      %v1965 = vunpack.c.l.b16 %v1782
      %v1966 = vunpack.c.h.b16 %v1782
      %v1967 = vunpack.c.l.b16 %v1783
      %v1968 = vunpack.c.h.b16 %v1783
      %v1969 = vunpack.c.l.b16 %v1784
      %v1970 = vunpack.c.h.b16 %v1784
      %v1971 = vunpack.c.l.b16 %v1785
      %v1972 = vunpack.c.h.b16 %v1785
      %v1973 = vunpack.c.l.b16 %v1786
      %v1974 = vunpack.c.h.b16 %v1786
      %v1975 = vunpack.c.l.b16 %v1787
      %v1976 = vunpack.c.h.b16 %v1787
      %v1977 = vunpack.c.l.b16 %v1788
      %v1978 = vunpack.c.h.b16 %v1788
      %v1979 = vunpack.c.l.b16 %v1789
      %v1980 = vunpack.c.h.b16 %v1789
      %v1981 = vunpack.c.l.b16 %v1790
      %v1982 = vunpack.c.h.b16 %v1790
      %v1983 = vpack.c.b16 %v1857, %v1855
      %v1984 = vpack.c.b16 %v1858, %v1856
      %v1985 = vpack.c.b16 %v1861, %v1859
      %v1986 = vpack.c.b16 %v1862, %v1860
      %v1987 = vpack.c.b16 %v1865, %v1863
      %v1988 = vpack.c.b16 %v1866, %v1864
      %v1989 = vpack.c.b16 %v1869, %v1867
      %v1990 = vpack.c.b16 %v1870, %v1868
      %v1991 = vpack.c.b16 %v1873, %v1871
      %v1992 = vpack.c.b16 %v1874, %v1872
      %v1993 = vpack.c.b16 %v1877, %v1875
      %v1994 = vpack.c.b16 %v1878, %v1876
      %v1995 = vpack.c.b16 %v1881, %v1879
      %v1996 = vpack.c.b16 %v1882, %v1880
      %v1997 = vpack.c.b16 %v1885, %v1883
      %v1998 = vpack.c.b16 %v1886, %v1884
      %v1999 = vpack.c.b16 %v1889, %v1887
      %v2000 = vpack.c.b16 %v1890, %v1888
      %v2001 = vpack.c.b16 %v1893, %v1891
      %v2002 = vpack.c.b16 %v1894, %v1892
      %v2003 = vpack.c.b16 %v1897, %v1895
      %v2004 = vpack.c.b16 %v1898, %v1896
      %v2005 = vpack.c.b16 %v1901, %v1899
      %v2006 = vpack.c.b16 %v1902, %v1900
      %v2007 = vpack.c.b16 %v1905, %v1903
      %v2008 = vpack.c.b16 %v1906, %v1904
      %v2009 = vpack.c.b16 %v1909, %v1907
      %v2010 = vpack.c.b16 %v1910, %v1908
      %v2011 = vpack.c.b16 %v1913, %v1911
      %v2012 = vpack.c.b16 %v1914, %v1912
      %v2013 = vpack.c.b16 %v1917, %v1915
      %v2014 = vpack.c.b16 %v1918, %v1916
      %v2015 = vpack.c.b16 %v1921, %v1919
      %v2016 = vpack.c.b16 %v1922, %v1920
      %v2017 = vpack.c.b16 %v1925, %v1923
      %v2018 = vpack.c.b16 %v1926, %v1924
      %v2019 = vpack.c.b16 %v1929, %v1927
      %v2020 = vpack.c.b16 %v1930, %v1928
      %v2021 = vpack.c.b16 %v1933, %v1931
      %v2022 = vpack.c.b16 %v1934, %v1932
      %v2023 = vpack.c.b16 %v1937, %v1935
      %v2024 = vpack.c.b16 %v1938, %v1936
      %v2025 = vpack.c.b16 %v1941, %v1939
      %v2026 = vpack.c.b16 %v1942, %v1940
      %v2027 = vpack.c.b16 %v1945, %v1943
      %v2028 = vpack.c.b16 %v1946, %v1944
      %v2029 = vpack.c.b16 %v1949, %v1947
      %v2030 = vpack.c.b16 %v1950, %v1948
      %v2031 = vpack.c.b16 %v1953, %v1951
      %v2032 = vpack.c.b16 %v1954, %v1952
      %v2033 = vpack.c.b16 %v1957, %v1955
      %v2034 = vpack.c.b16 %v1958, %v1956
      %v2035 = vpack.c.b16 %v1961, %v1959
      %v2036 = vpack.c.b16 %v1962, %v1960
      %v2037 = vpack.c.b16 %v1965, %v1963
      %v2038 = vpack.c.b16 %v1966, %v1964
      %v2039 = vpack.c.b16 %v1969, %v1967
      %v2040 = vpack.c.b16 %v1970, %v1968
      %v2041 = vpack.c.b16 %v1973, %v1971
      %v2042 = vpack.c.b16 %v1974, %v1972
      %v2043 = vpack.c.b16 %v1977, %v1975
      %v2044 = vpack.c.b16 %v1978, %v1976
      %v2045 = vpack.c.b16 %v1981, %v1979
      %v2046 = vpack.c.b16 %v1982, %v1980
      %2111 = vmatprep.subr.bf16.mxu0 %v1984
      %2112 = vmatpush1.bf16.msra.mxu0 %v1983
      %2113 = vmatprep.subr.bf16.mxu0 %v1986
      %2114 = vmatpush1.bf16.msra.mxu0 %v1985
      %2115 = vmatprep.subr.bf16.mxu0 %v1988
      %2116 = vmatpush1.bf16.msra.mxu0 %v1987
      %2117 = vmatprep.subr.bf16.mxu0 %v1990
      %2118 = vmatpush1.bf16.msra.mxu0 %v1989
      %2119 = vmatprep.subr.bf16.mxu0 %v1992
      %2120 = vmatpush1.bf16.msra.mxu0 %v1991
      %2121 = vmatprep.subr.bf16.mxu0 %v1994
      %2122 = vmatpush1.bf16.msra.mxu0 %v1993
      %2123 = vmatprep.subr.bf16.mxu0 %v1996
      %2124 = vmatpush1.bf16.msra.mxu0 %v1995
      %2125 = vmatprep.subr.bf16.mxu0 %v1998
      %2126 = vmatpush1.bf16.msra.mxu0 %v1997
      %2127 = vmatprep.subr.bf16.mxu0 %v2000
      %2128 = vmatpush1.bf16.msra.mxu0 %v1999
      %2129 = vmatprep.subr.bf16.mxu0 %v2002
      %2130 = vmatpush1.bf16.msra.mxu0 %v2001
      %2131 = vmatprep.subr.bf16.mxu0 %v2004
      %2132 = vmatpush1.bf16.msra.mxu0 %v2003
      %2133 = vmatprep.subr.bf16.mxu0 %v2006
      %2134 = vmatpush1.bf16.msra.mxu0 %v2005
      %2135 = vmatprep.subr.bf16.mxu0 %v2008
      %2136 = vmatpush1.bf16.msra.mxu0 %v2007
      %2137 = vmatprep.subr.bf16.mxu0 %v2010
      %2138 = vmatpush1.bf16.msra.mxu0 %v2009
      %2139 = vmatprep.subr.bf16.mxu0 %v2012
      %2140 = vmatpush1.bf16.msra.mxu0 %v2011
      %2141 = vmatprep.subr.bf16.mxu0 %v2014
      %2142 = vmatpush1.bf16.msra.mxu0 %v2013
      %2143 = vmatprep.mubr.bf16.mxu0 %v1724
      %2144 = vmatmul.mubr.bf16.gmra.mrb[0].mxu0 %v1723
      %v2145 = vpop.f32.mrb[0].mxu0
      %v2146 = vadd.f32 0.0, %v2145
      %v2147 = vpop.f32.mrb[0].mxu0
      %v2148 = vadd.f32 0.0, %v2147
      %v2149 = vpop.f32.mrb[0].mxu0
      %v2150 = vpop.f32.mrb[0].mxu0
      %2151 = vdwg.mxu0
      %2152 = vmatprep.subr.bf16.mxu0 %v2016
      %2153 = vmatpush1.bf16.msra.mxu0 %v2015
      %2154 = vmatprep.subr.bf16.mxu0 %v2018
      %2155 = vmatpush1.bf16.msra.mxu0 %v2017
      %2156 = vmatprep.subr.bf16.mxu0 %v2020
      %2157 = vmatpush1.bf16.msra.mxu0 %v2019
      %2158 = vmatprep.subr.bf16.mxu0 %v2022
      %2159 = vmatpush1.bf16.msra.mxu0 %v2021
      %2160 = vmatprep.subr.bf16.mxu0 %v2024
      %2161 = vmatpush1.bf16.msra.mxu0 %v2023
      %2162 = vmatprep.subr.bf16.mxu0 %v2026
      %2163 = vmatpush1.bf16.msra.mxu0 %v2025
      %2164 = vmatprep.subr.bf16.mxu0 %v2028
      %2165 = vmatpush1.bf16.msra.mxu0 %v2027
      %2166 = vmatprep.subr.bf16.mxu0 %v2030
      %2167 = vmatpush1.bf16.msra.mxu0 %v2029
      %2168 = vmatprep.subr.bf16.mxu0 %v2032
      %2169 = vmatpush1.bf16.msra.mxu0 %v2031
      %2170 = vmatprep.subr.bf16.mxu0 %v2034
      %2171 = vmatpush1.bf16.msra.mxu0 %v2033
      %2172 = vmatprep.subr.bf16.mxu0 %v2036
      %2173 = vmatpush1.bf16.msra.mxu0 %v2035
      %2174 = vmatprep.subr.bf16.mxu0 %v2038
      %2175 = vmatpush1.bf16.msra.mxu0 %v2037
      %2176 = vmatprep.subr.bf16.mxu0 %v2040
      %2177 = vmatpush1.bf16.msra.mxu0 %v2039
      %2178 = vmatprep.subr.bf16.mxu0 %v2042
      %2179 = vmatpush1.bf16.msra.mxu0 %v2041
      %2180 = vmatprep.subr.bf16.mxu0 %v2044
      %2181 = vmatpush1.bf16.msra.mxu0 %v2043
      %2182 = vmatprep.subr.bf16.mxu0 %v2046
      %2183 = vmatpush1.bf16.msra.mxu0 %v2045
      %2184 = vmatprep.mubr.bf16.mxu0 %v1726
      %2185 = vmatmul.mubr.bf16.gmra.mrb[0].mxu0 %v1725
      %v2186 = vpop.f32.mrb[0].mxu0
      %v2187 = vadd.f32 %v2146, %v2186
      %v2188 = vpop.f32.mrb[0].mxu0
      %v2189 = vadd.f32 %v2148, %v2188
      %v2190 = vpop.f32.mrb[0].mxu0
      %v2191 = vpop.f32.mrb[0].mxu0
      %2192 = vdwg.mxu0
      %v2193 = vmin.f32 %v2187, %v2189
      %2194 = vmin.xlane.f32.xlu0 %v2193
      %v2195 = vpop.xlane.xlu0 %2194
      %v2196 = vmax.f32 %v2187, %v2189
      %2197 = vmax.xlane.f32.xlu0 %v2196
      %v2198 = vpop.xlane.xlu0 %2197
      %v2199 = vsub.f32 %v2187, %v2195
      %v2200 = vsub.f32 %v2189, %v2195
      %v2201 = vsub.f32 %v2198, %v2195
      %v2202 = vadd.f32 %v2201, 1e-08
      %v2203 = vrcp.pop %v2202
      %v2204 = vmul.f32 %v2199, %v2203
      %v2205 = vmul.f32 %v2200, %v2203
      %2206 = vst [vmem:[%s271] sm:$0xff] %v2204
      %2207 = vst [vmem:[%s271 + $0x8] sm:$0xff] %v2205
      %p2208 = scmp.lt.s32.totalorder %s17, 3
      %s2209 = scalar_select %p2208, %s17, 3
      %s2210 = smul.addr %s2209, 2
      %s2211 = smul.addr %s2210, 8
      %s2212 = scalar_lea.vmem %s6, %s2211
      // Predicated region
      $region45: #{energy_mixup.1} parent=43 // pred_check
        %p2213 = pneg %p171
      $region46: #{energy_mixup.1} parent=43 // pred_check_branch
        %2215 = sbr.rel (%p2213) target = $region48
      $region47: #{energy_mixup.1} parent=43 // pred_region
        _
      $region48: #{energy_mixup.1} parent=43 // pred_fallthru
        _
    $region44: #{energy_mixup.1} parent=5 // pred_fallthru
      _
    %p2216 = scmp.le.s32.totalorder 2, %s12
    // Predicated region
    $region49: #{energy_mixup.1} parent=5 // pred_check
      %p2217 = pneg %p2216
    $region50: #{energy_mixup.1} parent=5 // pred_check_branch
      %2219 = sbr.rel (%p2217) target = $region52
    $region51: #{energy_mixup.1} parent=5 // pred_region
      %s2220 = ssub.s32 %s12, 2
      // Predicated region
      $region53: #{energy_mixup.1} parent=51 // pred_check
        %p2221 = pneg %p177
      $region54: #{energy_mixup.1} parent=51 // pred_check_branch
        %2223 = sbr.rel (%p2221) target = $region56
      $region55: #{energy_mixup.1} parent=51 // pred_region
        %p2224 = scmp.lt.s32.totalorder %s18, 3
        %s2225 = scalar_select %p2224, %s18, 3
        %s2226 = smul.addr %s2225, 2
        %s2227 = smul.addr %s2226, 8
        %s2228 = scalar_lea.vmem %s6, %s2227
      $region56: #{energy_mixup.1} parent=51 // pred_fallthru
        _
    $region52: #{energy_mixup.1} parent=5 // pred_fallthru
      _
  $region6: #{energy_mixup.1} parent=0 // loop_footer
    %s16 = sadd.s32 1, %s12
  $region7: #{energy_mixup.1} parent=0 // loop_footer_branch
    %11 = sbr.rel target = $region3
  $region8: #{energy_mixup.1} parent=0 // loop_exit
    _

</llo_original>
